<compile_context>
chip_gen: v7x
topology: tpu7x:2x2x1
jax: 0.10.0
libtpu: 0.0.40
codegen_flags: <defaults>
</compile_context>

<pallas_src>
import jax
import jax.numpy as jnp
from jax.experimental import pallas as pl
from jax.experimental.pallas import tpu as pltpu

D_IN, H1, H2, D_OUT = 784, 512, 256, 10
D_OUT_PAD = 128      # lane-dense output stores (full vst, no masked partials)
TILE_B_MAX = 512     # per-step footprint ~5 MiB; big enough to hide step overhead


def _pick_tile_b(B):
    """Sublane-aligned batch tile; aim for >= 2 grid steps (v7x megacore), cap 512."""
    if B <= 8:
        return 8
    target = min(TILE_B_MAX, (B + 1) // 2)   # at least 2 grid steps
    return -(-target // 8) * 8               # round up to a multiple of 8


def mlp_kernel(x_ref, w1_ref, b1_ref, w2_ref, b2_ref, w3_ref, b3_ref, o_ref, h1_ref):
    # In-kernel f32 -> bf16 cast of the activations (no wrapper-side copy of x).
    x = x_ref[...].astype(jnp.bfloat16)
    # Layer 1: Linear(784 -> 512) + ReLU   (bf16 MXU inputs, f32 accumulate)
    h1 = jnp.dot(x, w1_ref[...], preferred_element_type=jnp.float32)
    h1_ref[...] = jnp.maximum(h1 + b1_ref[...], 0.0).astype(jnp.bfloat16)
    # Layer 2: Linear(512 -> 256) + ReLU
    h2 = jnp.dot(h1_ref[...], w2_ref[...], preferred_element_type=jnp.float32)
    h2 = jnp.maximum(h2 + b2_ref[...], 0.0).astype(jnp.bfloat16)
    # Layer 3: Linear(256 -> 10), lane-padded to 128 output columns; bf16 store.
    out = jnp.dot(h2, w3_ref[...], preferred_element_type=jnp.float32)
    o_ref[...] = (out + b3_ref[...]).astype(o_ref.dtype)


def prepare_params(w1, b1, w2, b2, w3, b3):
    """One-time (outside the per-step jit) cast/pad of the parameters:
    bf16 (in, out) weights, f32 row biases, layer-3 lane-padded 10 -> 128."""
    w1p = w1.astype(jnp.bfloat16)
    w2p = w2.astype(jnp.bfloat16)
    w3p = jnp.zeros((H2, D_OUT_PAD), jnp.bfloat16).at[:, :D_OUT].set(
        w3.astype(jnp.bfloat16))
    b1p = b1.astype(jnp.float32).reshape(1, H1)
    b2p = b2.astype(jnp.float32).reshape(1, H2)
    b3p = jnp.zeros((1, D_OUT_PAD), jnp.float32).at[:, :D_OUT].set(
        b3.astype(jnp.float32).reshape(1, D_OUT))
    return w1p, b1p, w2p, b2p, w3p, b3p


def mlp_forward(x, w1p, b1p, w2p, b2p, w3p, b3p):
    B = x.shape[0]
    tile_b = _pick_tile_b(B)
    grid_b = pl.cdiv(B, tile_b)
    B_pad = grid_b * tile_b
    if B_pad != B:
        # Minimal row pad so the batch grid divides evenly; padded output rows are
        # sliced away below (no cross-row reductions inside the kernel).
        x = jnp.pad(x, ((0, B_pad - B), (0, 0)))

    const = lambda shape: pl.BlockSpec(shape, lambda i: (0, 0))  # VMEM-resident
    out = pl.pallas_call(
        mlp_kernel,
        out_shape=jax.ShapeDtypeStruct((B_pad, D_OUT_PAD), jnp.bfloat16),
        grid=(grid_b,),
        in_specs=[
            pl.BlockSpec((tile_b, D_IN), lambda i: (i, 0)),   # x tile (pipelined)
            const((D_IN, H1)), const((1, H1)),                # w1, b1
            const((H1, H2)), const((1, H2)),                  # w2, b2
            const((H2, D_OUT_PAD)), const((1, D_OUT_PAD)),    # w3, b3
        ],
        out_specs=pl.BlockSpec((tile_b, D_OUT_PAD), lambda i: (i, 0)),
        scratch_shapes=[pltpu.VMEM((tile_b, H1), jnp.bfloat16)],
        compiler_params=pltpu.CompilerParams(
            dimension_semantics=("parallel",),
            vmem_limit_bytes=32 << 20,
        ),
    )(x, w1p, b1p, w2p, b2p, w3p, b3p)
    return out[:B, :D_OUT].astype(jnp.float32)


def init_params(key):
    # Deterministic init mimicking nn.Linear's U(-1/sqrt(fan_in), 1/sqrt(fan_in)).
    def linear(key, fan_in, fan_out):
        kw, kb = jax.random.split(key)
        bound = 1.0 / jnp.sqrt(fan_in)
        # stored as (in, out) so the kernel does x @ W + b
        w = jax.random.uniform(kw, (fan_in, fan_out), jnp.float32, -bound, bound)
        b = jax.random.uniform(kb, (1, fan_out), jnp.float32, -bound, bound)
        return w, b

    k1, k2, k3 = jax.random.split(key, 3)
    w1, b1 = linear(k1, D_IN, H1)
    w2, b2 = linear(k2, H1, H2)
    w3, b3 = linear(k3, H2, D_OUT)
    return w1, b1, w2, b2, w3, b3


def ref_forward_bf16(x, w1, b1, w2, b2, w3, b3):
    # Pure-JAX reference mirroring the kernel's bf16-input / f32-accumulate math.
    bf = lambda a: a.astype(jnp.bfloat16)
    h1 = jnp.maximum(
        jnp.dot(bf(x), bf(w1), preferred_element_type=jnp.float32) + b1, 0.0)
    h2 = jnp.maximum(
        jnp.dot(bf(h1), bf(w2), preferred_element_type=jnp.float32) + b2, 0.0)
    return jnp.dot(bf(h2), bf(w3), preferred_element_type=jnp.float32) + b3


if __name__ == "__main__":
    key = jax.random.PRNGKey(0)
    kx, kp = jax.random.split(key)

    batch = 8
    x = jax.random.normal(kx, (batch, D_IN), jnp.float32)
    raw_params = init_params(kp)
    params = prepare_params(*raw_params)   # one-time cast/pad, outside the jit

    fwd = jax.jit(mlp_forward)
    out = jax.block_until_ready(fwd(x, *params))

    ref = ref_forward_bf16(x, *raw_params)
    assert out.shape == (batch, D_OUT)
    assert jnp.allclose(out, ref, atol=2e-2, rtol=2e-2), float(
        jnp.max(jnp.abs(out - ref)))

    print("KERNEL_OK")
</pallas_src>

<mosaic_0001>
module attributes {stable_mosaic.version = 11 : i64} {
  func.func @mlp_kernel(%arg0: i32, %arg1: memref<8x784xf32, #tpu.memory_space<vmem>>, %arg2: memref<784x512xbf16, #tpu.memory_space<vmem>>, %arg3: memref<1x512xf32, #tpu.memory_space<vmem>>, %arg4: memref<512x256xbf16, #tpu.memory_space<vmem>>, %arg5: memref<1x256xf32, #tpu.memory_space<vmem>>, %arg6: memref<256x128xbf16, #tpu.memory_space<vmem>>, %arg7: memref<1x128xf32, #tpu.memory_space<vmem>>, %arg8: memref<8x128xbf16, #tpu.memory_space<vmem>>, %arg9: memref<8x512xbf16, #tpu.memory_space<vmem>>) attributes {dimension_semantics = [#tpu.dimension_semantics<parallel>], iteration_bounds = array<i64: 1>, scalar_prefetch = 0 : i64, scratch_operands = 1 : i64, tpu.core_type = #tpu.core_type<tc>, window_params = [{transform_indices = @transform_0, window_bounds = array<i64: 8, 784>}, {pipeline_mode = #tpu.pipeline_mode<synchronous>, transform_indices = @transform_1, window_bounds = array<i64: 784, 512>}, {pipeline_mode = #tpu.pipeline_mode<synchronous>, transform_indices = @transform_2, window_bounds = array<i64: 1, 512>}, {pipeline_mode = #tpu.pipeline_mode<synchronous>, transform_indices = @transform_3, window_bounds = array<i64: 512, 256>}, {pipeline_mode = #tpu.pipeline_mode<synchronous>, transform_indices = @transform_4, window_bounds = array<i64: 1, 256>}, {pipeline_mode = #tpu.pipeline_mode<synchronous>, transform_indices = @transform_5, window_bounds = array<i64: 256, 128>}, {pipeline_mode = #tpu.pipeline_mode<synchronous>, transform_indices = @transform_6, window_bounds = array<i64: 1, 128>}, {transform_indices = @transform_7, window_bounds = array<i64: 8, 128>}]} {
    %c0 = arith.constant 0 : index
    %c0_0 = arith.constant 0 : index
    %0 = vector.load %arg1[%c0, %c0_0] : memref<8x784xf32, #tpu.memory_space<vmem>>, vector<8x784xf32>
    %1 = arith.truncf %0 : vector<8x784xf32> to vector<8x784xbf16>
    %c0_1 = arith.constant 0 : index
    %c0_2 = arith.constant 0 : index
    %2 = vector.load %arg2[%c0_1, %c0_2] : memref<784x512xbf16, #tpu.memory_space<vmem>>, vector<784x512xbf16>
    %cst = arith.constant dense<0.000000e+00> : vector<8x512xf32>
    %3 = tpu.matmul %1, %2, %cst {dimension_numbers = #tpu.dot_dimension_numbers<[1], [0], [0], [1], [0, 0, 1, 1], [], []>} : vector<8x784xbf16>, vector<784x512xbf16>, vector<8x512xf32> -> vector<8x512xf32>
    %c0_3 = arith.constant 0 : index
    %c0_4 = arith.constant 0 : index
    %4 = vector.load %arg3[%c0_3, %c0_4] : memref<1x512xf32, #tpu.memory_space<vmem>>, vector<1x512xf32>
    %5 = vector.broadcast %4 : vector<1x512xf32> to vector<8x512xf32>
    %6 = arith.addf %3, %5 : vector<8x512xf32>
    %cst_5 = arith.constant 0.000000e+00 : f32
    %7 = vector.broadcast %cst_5 : f32 to vector<8x512xf32>
    %8 = arith.maximumf %6, %7 : vector<8x512xf32>
    %9 = arith.truncf %8 : vector<8x512xf32> to vector<8x512xbf16>
    %c0_6 = arith.constant 0 : index
    %c0_7 = arith.constant 0 : index
    %10 = vector.load %arg9[%c0_6, %c0_7] : memref<8x512xbf16, #tpu.memory_space<vmem>>, vector<8x512xbf16>
    tpu.vector_store %arg9[%c0_6, %c0_7], %9 {strides = array<i32>} : memref<8x512xbf16, #tpu.memory_space<vmem>>, vector<8x512xbf16>,
    %c0_8 = arith.constant 0 : index
    %c0_9 = arith.constant 0 : index
    %11 = vector.load %arg9[%c0_8, %c0_9] : memref<8x512xbf16, #tpu.memory_space<vmem>>, vector<8x512xbf16>
    %c0_10 = arith.constant 0 : index
    %c0_11 = arith.constant 0 : index
    %12 = vector.load %arg4[%c0_10, %c0_11] : memref<512x256xbf16, #tpu.memory_space<vmem>>, vector<512x256xbf16>
    %cst_12 = arith.constant dense<0.000000e+00> : vector<8x256xf32>
    %13 = tpu.matmul %11, %12, %cst_12 {dimension_numbers = #tpu.dot_dimension_numbers<[1], [0], [0], [1], [0, 0, 1, 1], [], []>} : vector<8x512xbf16>, vector<512x256xbf16>, vector<8x256xf32> -> vector<8x256xf32>
    %c0_13 = arith.constant 0 : index
    %c0_14 = arith.constant 0 : index
    %14 = vector.load %arg5[%c0_13, %c0_14] : memref<1x256xf32, #tpu.memory_space<vmem>>, vector<1x256xf32>
    %15 = vector.broadcast %14 : vector<1x256xf32> to vector<8x256xf32>
    %16 = arith.addf %13, %15 : vector<8x256xf32>
    %cst_15 = arith.constant 0.000000e+00 : f32
    %17 = vector.broadcast %cst_15 : f32 to vector<8x256xf32>
    %18 = arith.maximumf %16, %17 : vector<8x256xf32>
    %19 = arith.truncf %18 : vector<8x256xf32> to vector<8x256xbf16>
    %c0_16 = arith.constant 0 : index
    %c0_17 = arith.constant 0 : index
    %20 = vector.load %arg6[%c0_16, %c0_17] : memref<256x128xbf16, #tpu.memory_space<vmem>>, vector<256x128xbf16>
    %cst_18 = arith.constant dense<0.000000e+00> : vector<8x128xf32>
    %21 = tpu.matmul %19, %20, %cst_18 {dimension_numbers = #tpu.dot_dimension_numbers<[1], [0], [0], [1], [0, 0, 1, 1], [], []>} : vector<8x256xbf16>, vector<256x128xbf16>, vector<8x128xf32> -> vector<8x128xf32>
    %c0_19 = arith.constant 0 : index
    %c0_20 = arith.constant 0 : index
    %22 = vector.load %arg7[%c0_19, %c0_20] : memref<1x128xf32, #tpu.memory_space<vmem>>, vector<1x128xf32>
    %23 = vector.broadcast %22 : vector<1x128xf32> to vector<8x128xf32>
    %24 = arith.addf %21, %23 : vector<8x128xf32>
    %25 = arith.truncf %24 : vector<8x128xf32> to vector<8x128xbf16>
    %c0_21 = arith.constant 0 : index
    %c0_22 = arith.constant 0 : index
    %26 = vector.load %arg8[%c0_21, %c0_22] : memref<8x128xbf16, #tpu.memory_space<vmem>>, vector<8x128xbf16>
    tpu.vector_store %arg8[%c0_21, %c0_22], %25 {strides = array<i32>} : memref<8x128xbf16, #tpu.memory_space<vmem>>, vector<8x128xbf16>,
    return
  }
  func.func @transform_0(%arg0: i32) -> (i32, i32) {
    %c0_i32 = arith.constant 0 : i32
    %c0_i32_0 = arith.constant 0 : i32
    return %arg0, %c0_i32 : i32, i32
  }
  func.func @transform_1(%arg0: i32) -> (i32, i32) {
    %c0_i32 = arith.constant 0 : i32
    %c0_i32_0 = arith.constant 0 : i32
    %c0_i32_1 = arith.constant 0 : i32
    return %c0_i32, %c0_i32_0 : i32, i32
  }
  func.func @transform_2(%arg0: i32) -> (i32, i32) {
    %c0_i32 = arith.constant 0 : i32
    %c0_i32_0 = arith.constant 0 : i32
    %c0_i32_1 = arith.constant 0 : i32
    return %c0_i32, %c0_i32_0 : i32, i32
  }
  func.func @transform_3(%arg0: i32) -> (i32, i32) {
    %c0_i32 = arith.constant 0 : i32
    %c0_i32_0 = arith.constant 0 : i32
    %c0_i32_1 = arith.constant 0 : i32
    return %c0_i32, %c0_i32_0 : i32, i32
  }
  func.func @transform_4(%arg0: i32) -> (i32, i32) {
    %c0_i32 = arith.constant 0 : i32
    %c0_i32_0 = arith.constant 0 : i32
    %c0_i32_1 = arith.constant 0 : i32
    return %c0_i32, %c0_i32_0 : i32, i32
  }
  func.func @transform_5(%arg0: i32) -> (i32, i32) {
    %c0_i32 = arith.constant 0 : i32
    %c0_i32_0 = arith.constant 0 : i32
    %c0_i32_1 = arith.constant 0 : i32
    return %c0_i32, %c0_i32_0 : i32, i32
  }
  func.func @transform_6(%arg0: i32) -> (i32, i32) {
    %c0_i32 = arith.constant 0 : i32
    %c0_i32_0 = arith.constant 0 : i32
    %c0_i32_1 = arith.constant 0 : i32
    return %c0_i32, %c0_i32_0 : i32, i32
  }
  func.func @transform_7(%arg0: i32) -> (i32, i32) {
    %c0_i32 = arith.constant 0 : i32
    %c0_i32_0 = arith.constant 0 : i32
    return %arg0, %c0_i32 : i32, i32
  }
}

</mosaic_0001>

<llo_original>
// kernel: mlp_forward.1
$region0: #{mlp_forward.1}
  #allocation0 [shape = 'u32[]', space=smem, size = 0x4, offset = 0x4, fixed_abs, tag = 'smem constant byte address 0x4 - core index']
  #allocation1 [shape = 'u32[144,128]{1,0:T(1,128)}', space=vmem, size = 0x12000, scoped, tag = 'internal scratch']
  #allocation2 [shape = 'bf16[8,512]{1,0:T(8,128)(2,1)}', space=vmem, size = 0x2000, scoped, tag = 'scratch operand']
  %s0 = inlined_call_operand.hbm [shape: f32[8,784], index: 0, kind: input, shape index: {}]
  %s1 = inlined_call_operand.hbm [shape: bf16[784,512], index: 1, kind: input, shape index: {}]
  %s2 = inlined_call_operand.vmem [shape: f32[1,512], index: 2, kind: input, shape index: {}]
  %s3 = inlined_call_operand.hbm [shape: bf16[512,256], index: 3, kind: input, shape index: {}]
  %s4 = inlined_call_operand.vmem [shape: f32[1,256], index: 4, kind: input, shape index: {}]
  %s5 = inlined_call_operand.hbm [shape: bf16[256,128], index: 5, kind: input, shape index: {}]
  %s6 = inlined_call_operand.vmem [shape: f32[1,128], index: 6, kind: input, shape index: {}]
  %s7 = inlined_call_operand.vmem [shape: bf16[8,128], index: 7, kind: output, shape index: {}]
  %s8 = sld [smem:[#allocation0]]
  $region54: #{mlp_forward.1} parent=0
    _
  %s10 = ssub.s32 1, %s8
  %s11 = scalar_select 0, %s10, %s8
  $region1: #{mlp_forward.1} parent=0
    #allocation3 [shape = 'u8[28672]{0}', space=vmem, size = 0x7000, scoped, tag = 'input window, operand 0, single buffered']
    #allocation4 [shape = 's32[1]{0}', space=sflag, size = 0x4, scoped, tag = 'scoped memory for mlp_forward.1']
    #allocation5 [shape = 'u8[802816]{0}', space=vmem, size = 0xc4000, scoped, tag = 'input window, operand 1, single buffered']
    #allocation6 [shape = 's32[1]{0}', space=sflag, size = 0x4, scoped, tag = 'scoped memory for mlp_forward.1']
    #allocation7 [shape = 'u8[262144]{0}', space=vmem, size = 0x40000, scoped, tag = 'input window, operand 3, single buffered']
    #allocation8 [shape = 'u8[65536]{0}', space=vmem, size = 0x10000, scoped, tag = 'input window, operand 5, single buffered']
    #allocation9 [shape = 's32[1]{0}', space=sflag, size = 0x4, scoped, tag = 'scoped memory for mlp_forward.1']
    %12 = vsyncpa [#allocation4], 0
    %13 = vsyncpa [#allocation6], 0
    %14 = vsyncpa [#allocation9], 0
    // Predicated region
    $region2: #{mlp_forward.1} parent=1 // pred_check
      _
    $region3: #{mlp_forward.1} parent=1 // pred_check_branch
      %16 = sbr.rel (0) target = $region5
    $region4: #{mlp_forward.1} parent=1 // pred_region
      %s18 = ssub.s32 896, 896
      %19 = vsyncadd [#allocation4], %s18
      %s21 = sshll.u32 [#allocation3], 4
      %s22 = int_to_ptr.vmem [resolvable:$true] %s21
      %24 = dma.hbm_to_vmem [thread:$0]  %s0, 896, %s22, [#allocation4]
    $region5: #{mlp_forward.1} parent=1 // pred_fallthru
      _
    // Predicated region
    $region6: #{mlp_forward.1} parent=1 // pred_check
      _
    $region7: #{mlp_forward.1} parent=1 // pred_check_branch
      %26 = sbr.rel (0) target = $region9
    $region8: #{mlp_forward.1} parent=1 // pred_region
      %s28 = ssub.s32 25088, 25088
      %29 = vsyncadd [#allocation6], %s28
      %s30 = sshll.u32 [#allocation5], 4
      %s31 = int_to_ptr.vmem [resolvable:$true] %s30
      %36 = dma.hbm_to_vmem [thread:$0]  %s1, 25088, %s31, [#allocation6], 256, 256, 16
    $region9: #{mlp_forward.1} parent=1 // pred_fallthru
      _
    // Predicated region
    $region10: #{mlp_forward.1} parent=1 // pred_check
      _
    $region11: #{mlp_forward.1} parent=1 // pred_check_branch
      %38 = sbr.rel (0) target = $region13
    $region12: #{mlp_forward.1} parent=1 // pred_region
      _
    $region13: #{mlp_forward.1} parent=1 // pred_fallthru
      _
    // Predicated region
    $region14: #{mlp_forward.1} parent=1 // pred_check
      _
    $region15: #{mlp_forward.1} parent=1 // pred_check_branch
      %40 = sbr.rel (0) target = $region17
    $region16: #{mlp_forward.1} parent=1 // pred_region
      %s42 = ssub.s32 8192, 8192
      %43 = vsyncadd [#allocation6], %s42
      %s44 = sshll.u32 [#allocation7], 4
      %s45 = int_to_ptr.vmem [resolvable:$true] %s44
      %50 = dma.hbm_to_vmem [thread:$0]  %s3, 8192, %s45, [#allocation6], 128, 128, 8
    $region17: #{mlp_forward.1} parent=1 // pred_fallthru
      _
    // Predicated region
    $region18: #{mlp_forward.1} parent=1 // pred_check
      _
    $region19: #{mlp_forward.1} parent=1 // pred_check_branch
      %52 = sbr.rel (0) target = $region21
    $region20: #{mlp_forward.1} parent=1 // pred_region
      _
    $region21: #{mlp_forward.1} parent=1 // pred_fallthru
      _
    // Predicated region
    $region22: #{mlp_forward.1} parent=1 // pred_check
      _
    $region23: #{mlp_forward.1} parent=1 // pred_check_branch
      %54 = sbr.rel (0) target = $region25
    $region24: #{mlp_forward.1} parent=1 // pred_region
      %s56 = ssub.s32 2048, 2048
      %57 = vsyncadd [#allocation9], %s56
      %s58 = sshll.u32 [#allocation8], 4
      %s59 = int_to_ptr.vmem [resolvable:$true] %s58
      %64 = dma.hbm_to_vmem [thread:$0]  %s5, 2048, %s59, [#allocation9], 64, 64, 4
    $region25: #{mlp_forward.1} parent=1 // pred_fallthru
      _
    // Predicated region
    $region26: #{mlp_forward.1} parent=1 // pred_check
      _
    $region27: #{mlp_forward.1} parent=1 // pred_check_branch
      %66 = sbr.rel (0) target = $region29
    $region28: #{mlp_forward.1} parent=1 // pred_region
      _
    $region29: #{mlp_forward.1} parent=1 // pred_fallthru
      _
    // Predicated region
    $region30: #{mlp_forward.1} parent=1 // pred_check
      _
    $region31: #{mlp_forward.1} parent=1 // pred_check_branch
      %68 = sbr.rel (0) target = $region33
    $region32: #{mlp_forward.1} parent=1 // pred_region
      %69 = dma.done [#allocation4], 896
    $region33: #{mlp_forward.1} parent=1 // pred_fallthru
      _
    // Predicated region
    $region34: #{mlp_forward.1} parent=1 // pred_check
      _
    $region35: #{mlp_forward.1} parent=1 // pred_check_branch
      %71 = sbr.rel (0) target = $region37
    $region36: #{mlp_forward.1} parent=1 // pred_region
      %72 = dma.done [#allocation6], 25088
    $region37: #{mlp_forward.1} parent=1 // pred_fallthru
      _
    // Predicated region
    $region38: #{mlp_forward.1} parent=1 // pred_check
      _
    $region39: #{mlp_forward.1} parent=1 // pred_check_branch
      %74 = sbr.rel (0) target = $region41
    $region40: #{mlp_forward.1} parent=1 // pred_region
      %75 = dma.done [#allocation6], 8192
    $region41: #{mlp_forward.1} parent=1 // pred_fallthru
      _
    // Predicated region
    $region42: #{mlp_forward.1} parent=1 // pred_check
      _
    $region43: #{mlp_forward.1} parent=1 // pred_check_branch
      %77 = sbr.rel (0) target = $region45
    $region44: #{mlp_forward.1} parent=1 // pred_region
      %78 = dma.done [#allocation9], 2048
    $region45: #{mlp_forward.1} parent=1 // pred_fallthru
      _
    %v80 = vld [vmem:[#allocation3] sm:$0xff]
    %v81 = vld [vmem:[#allocation3 + $0x8] sm:$0xff]
    %v82 = vld [vmem:[#allocation3 + $0x10] sm:$0xff]
    %v83 = vld [vmem:[#allocation3 + $0x18] sm:$0xff]
    %v84 = vld [vmem:[#allocation3 + $0x20] sm:$0xff]
    %v85 = vld [vmem:[#allocation3 + $0x28] sm:$0xff]
    %v86 = vld [vmem:[#allocation3 + $0x30] sm:$0xff]
    %v87 = vpack.c.bf16 %v80, %v80
    %v88 = vpack.c.bf16 %v81, %v81
    %v89 = vpack.c.bf16 %v82, %v82
    %v90 = vpack.c.bf16 %v83, %v83
    %v91 = vpack.c.bf16 %v84, %v84
    %v92 = vpack.c.bf16 %v85, %v85
    %v93 = vpack.c.bf16 %v86, %v86
    %v94 = vld [vmem:[#allocation5] sm:$0xff]
    %v95 = vld [vmem:[#allocation5 + $0x8] sm:$0xff]
    %v96 = vld [vmem:[#allocation5 + $0x10] sm:$0xff]
    %v97 = vld [vmem:[#allocation5 + $0x18] sm:$0xff]
    %v98 = vld [vmem:[#allocation5 + $0x20] sm:$0xff]
    %v99 = vld [vmem:[#allocation5 + $0x28] sm:$0xff]
    %v100 = vld [vmem:[#allocation5 + $0x30] sm:$0xff]
    %v101 = vld [vmem:[#allocation5 + $0x38] sm:$0xff]
    %v102 = vld [vmem:[#allocation5 + $0x40] sm:$0xff]
    %v103 = vld [vmem:[#allocation5 + $0x48] sm:$0xff]
    %v104 = vld [vmem:[#allocation5 + $0x50] sm:$0xff]
    %v105 = vld [vmem:[#allocation5 + $0x58] sm:$0xff]
    %v106 = vld [vmem:[#allocation5 + $0x60] sm:$0xff]
    %v107 = vld [vmem:[#allocation5 + $0x68] sm:$0xff]
    %v108 = vld [vmem:[#allocation5 + $0x70] sm:$0xff]
    %v109 = vld [vmem:[#allocation5 + $0x78] sm:$0xff]
    %v110 = vld [vmem:[#allocation5 + $0x80] sm:$0xff]
    %v111 = vld [vmem:[#allocation5 + $0x88] sm:$0xff]
    %v112 = vld [vmem:[#allocation5 + $0x90] sm:$0xff]
    %v113 = vld [vmem:[#allocation5 + $0x98] sm:$0xff]
    %v114 = vld [vmem:[#allocation5 + $0xa0] sm:$0xff]
    %v115 = vld [vmem:[#allocation5 + $0xa8] sm:$0xff]
    %v116 = vld [vmem:[#allocation5 + $0xb0] sm:$0xff]
    %v117 = vld [vmem:[#allocation5 + $0xb8] sm:$0xff]
    %v118 = vld [vmem:[#allocation5 + $0xc0] sm:$0xff]
    %v119 = vld [vmem:[#allocation5 + $0xc8] sm:$0xff]
    %v120 = vld [vmem:[#allocation5 + $0xd0] sm:$0xff]
    %v121 = vld [vmem:[#allocation5 + $0xd8] sm:$0xff]
    %v122 = vld [vmem:[#allocation5 + $0xe0] sm:$0xff]
    %v123 = vld [vmem:[#allocation5 + $0xe8] sm:$0xff]
    %v124 = vld [vmem:[#allocation5 + $0xf0] sm:$0xff]
    %v125 = vld [vmem:[#allocation5 + $0xf8] sm:$0xff]
    %v126 = vld [vmem:[#allocation5 + $0x100] sm:$0xff]
    %v127 = vld [vmem:[#allocation5 + $0x108] sm:$0xff]
    %v128 = vld [vmem:[#allocation5 + $0x110] sm:$0xff]
    %v129 = vld [vmem:[#allocation5 + $0x118] sm:$0xff]
    %v130 = vld [vmem:[#allocation5 + $0x120] sm:$0xff]
    %v131 = vld [vmem:[#allocation5 + $0x128] sm:$0xff]
    %v132 = vld [vmem:[#allocation5 + $0x130] sm:$0xff]
    %v133 = vld [vmem:[#allocation5 + $0x138] sm:$0xff]
    %v134 = vld [vmem:[#allocation5 + $0x140] sm:$0xff]
    %v135 = vld [vmem:[#allocation5 + $0x148] sm:$0xff]
    %v136 = vld [vmem:[#allocation5 + $0x150] sm:$0xff]
    %v137 = vld [vmem:[#allocation5 + $0x158] sm:$0xff]
    %v138 = vld [vmem:[#allocation5 + $0x160] sm:$0xff]
    %v139 = vld [vmem:[#allocation5 + $0x168] sm:$0xff]
    %v140 = vld [vmem:[#allocation5 + $0x170] sm:$0xff]
    %v141 = vld [vmem:[#allocation5 + $0x178] sm:$0xff]
    %v142 = vld [vmem:[#allocation5 + $0x180] sm:$0xff]
    %v143 = vld [vmem:[#allocation5 + $0x188] sm:$0xff]
    %v144 = vld [vmem:[#allocation5 + $0x190] sm:$0xff]
    %v145 = vld [vmem:[#allocation5 + $0x198] sm:$0xff]
    %v146 = vld [vmem:[#allocation5 + $0x1a0] sm:$0xff]
    %v147 = vld [vmem:[#allocation5 + $0x1a8] sm:$0xff]
    %v148 = vld [vmem:[#allocation5 + $0x1b0] sm:$0xff]
    %v149 = vld [vmem:[#allocation5 + $0x1b8] sm:$0xff]
    %v150 = vld [vmem:[#allocation5 + $0x1c0] sm:$0xff]
    %v151 = vld [vmem:[#allocation5 + $0x1c8] sm:$0xff]
    %v152 = vld [vmem:[#allocation5 + $0x1d0] sm:$0xff]
    %v153 = vld [vmem:[#allocation5 + $0x1d8] sm:$0xff]
    %v154 = vld [vmem:[#allocation5 + $0x1e0] sm:$0xff]
    %v155 = vld [vmem:[#allocation5 + $0x1e8] sm:$0xff]
    %v156 = vld [vmem:[#allocation5 + $0x1f0] sm:$0xff]
    %v157 = vld [vmem:[#allocation5 + $0x1f8] sm:$0xff]
    %v158 = vld [vmem:[#allocation5 + $0x200] sm:$0xff]
    %v159 = vld [vmem:[#allocation5 + $0x208] sm:$0xff]
    %v160 = vld [vmem:[#allocation5 + $0x210] sm:$0xff]
    %v161 = vld [vmem:[#allocation5 + $0x218] sm:$0xff]
    %v162 = vld [vmem:[#allocation5 + $0x220] sm:$0xff]
    %v163 = vld [vmem:[#allocation5 + $0x228] sm:$0xff]
    %v164 = vld [vmem:[#allocation5 + $0x230] sm:$0xff]
    %v165 = vld [vmem:[#allocation5 + $0x238] sm:$0xff]
    %v166 = vld [vmem:[#allocation5 + $0x240] sm:$0xff]
    %v167 = vld [vmem:[#allocation5 + $0x248] sm:$0xff]
    %v168 = vld [vmem:[#allocation5 + $0x250] sm:$0xff]
    %v169 = vld [vmem:[#allocation5 + $0x258] sm:$0xff]
    %v170 = vld [vmem:[#allocation5 + $0x260] sm:$0xff]
    %v171 = vld [vmem:[#allocation5 + $0x268] sm:$0xff]
    %v172 = vld [vmem:[#allocation5 + $0x270] sm:$0xff]
    %v173 = vld [vmem:[#allocation5 + $0x278] sm:$0xff]
    %v174 = vld [vmem:[#allocation5 + $0x280] sm:$0xff]
    %v175 = vld [vmem:[#allocation5 + $0x288] sm:$0xff]
    %v176 = vld [vmem:[#allocation5 + $0x290] sm:$0xff]
    %v177 = vld [vmem:[#allocation5 + $0x298] sm:$0xff]
    %v178 = vld [vmem:[#allocation5 + $0x2a0] sm:$0xff]
    %v179 = vld [vmem:[#allocation5 + $0x2a8] sm:$0xff]
    %v180 = vld [vmem:[#allocation5 + $0x2b0] sm:$0xff]
    %v181 = vld [vmem:[#allocation5 + $0x2b8] sm:$0xff]
    %v182 = vld [vmem:[#allocation5 + $0x2c0] sm:$0xff]
    %v183 = vld [vmem:[#allocation5 + $0x2c8] sm:$0xff]
    %v184 = vld [vmem:[#allocation5 + $0x2d0] sm:$0xff]
    %v185 = vld [vmem:[#allocation5 + $0x2d8] sm:$0xff]
    %v186 = vld [vmem:[#allocation5 + $0x2e0] sm:$0xff]
    %v187 = vld [vmem:[#allocation5 + $0x2e8] sm:$0xff]
    %v188 = vld [vmem:[#allocation5 + $0x2f0] sm:$0xff]
    %v189 = vld [vmem:[#allocation5 + $0x2f8] sm:$0xff]
    %v190 = vld [vmem:[#allocation5 + $0x300] sm:$0xff]
    %v191 = vld [vmem:[#allocation5 + $0x308] sm:$0xff]
    %v192 = vld [vmem:[#allocation5 + $0x310] sm:$0xff]
    %v193 = vld [vmem:[#allocation5 + $0x318] sm:$0xff]
    %v194 = vld [vmem:[#allocation5 + $0x320] sm:$0xff]
    %v195 = vld [vmem:[#allocation5 + $0x328] sm:$0xff]
    %v196 = vld [vmem:[#allocation5 + $0x330] sm:$0xff]
    %v197 = vld [vmem:[#allocation5 + $0x338] sm:$0xff]
    %v198 = vld [vmem:[#allocation5 + $0x340] sm:$0xff]
    %v199 = vld [vmem:[#allocation5 + $0x348] sm:$0xff]
    %v200 = vld [vmem:[#allocation5 + $0x350] sm:$0xff]
    %v201 = vld [vmem:[#allocation5 + $0x358] sm:$0xff]
    %v202 = vld [vmem:[#allocation5 + $0x360] sm:$0xff]
    %v203 = vld [vmem:[#allocation5 + $0x368] sm:$0xff]
    %v204 = vld [vmem:[#allocation5 + $0x370] sm:$0xff]
    %v205 = vld [vmem:[#allocation5 + $0x378] sm:$0xff]
    %v206 = vld [vmem:[#allocation5 + $0x380] sm:$0xff]
    %v207 = vld [vmem:[#allocation5 + $0x388] sm:$0xff]
    %v208 = vld [vmem:[#allocation5 + $0x390] sm:$0xff]
    %v209 = vld [vmem:[#allocation5 + $0x398] sm:$0xff]
    %v210 = vld [vmem:[#allocation5 + $0x3a0] sm:$0xff]
    %v211 = vld [vmem:[#allocation5 + $0x3a8] sm:$0xff]
    %v212 = vld [vmem:[#allocation5 + $0x3b0] sm:$0xff]
    %v213 = vld [vmem:[#allocation5 + $0x3b8] sm:$0xff]
    %v214 = vld [vmem:[#allocation5 + $0x3c0] sm:$0xff]
    %v215 = vld [vmem:[#allocation5 + $0x3c8] sm:$0xff]
    %v216 = vld [vmem:[#allocation5 + $0x3d0] sm:$0xff]
    %v217 = vld [vmem:[#allocation5 + $0x3d8] sm:$0xff]
    %v218 = vld [vmem:[#allocation5 + $0x3e0] sm:$0xff]
    %v219 = vld [vmem:[#allocation5 + $0x3e8] sm:$0xff]
    %v220 = vld [vmem:[#allocation5 + $0x3f0] sm:$0xff]
    %v221 = vld [vmem:[#allocation5 + $0x3f8] sm:$0xff]
    %v222 = vld [vmem:[#allocation5 + $0x400] sm:$0xff]
    %v223 = vld [vmem:[#allocation5 + $0x408] sm:$0xff]
    %v224 = vld [vmem:[#allocation5 + $0x410] sm:$0xff]
    %v225 = vld [vmem:[#allocation5 + $0x418] sm:$0xff]
    %v226 = vld [vmem:[#allocation5 + $0x420] sm:$0xff]
    %v227 = vld [vmem:[#allocation5 + $0x428] sm:$0xff]
    %v228 = vld [vmem:[#allocation5 + $0x430] sm:$0xff]
    %v229 = vld [vmem:[#allocation5 + $0x438] sm:$0xff]
    %v230 = vld [vmem:[#allocation5 + $0x440] sm:$0xff]
    %v231 = vld [vmem:[#allocation5 + $0x448] sm:$0xff]
    %v232 = vld [vmem:[#allocation5 + $0x450] sm:$0xff]
    %v233 = vld [vmem:[#allocation5 + $0x458] sm:$0xff]
    %v234 = vld [vmem:[#allocation5 + $0x460] sm:$0xff]
    %v235 = vld [vmem:[#allocation5 + $0x468] sm:$0xff]
    %v236 = vld [vmem:[#allocation5 + $0x470] sm:$0xff]
    %v237 = vld [vmem:[#allocation5 + $0x478] sm:$0xff]
    %v238 = vld [vmem:[#allocation5 + $0x480] sm:$0xff]
    %v239 = vld [vmem:[#allocation5 + $0x488] sm:$0xff]
    %v240 = vld [vmem:[#allocation5 + $0x490] sm:$0xff]
    %v241 = vld [vmem:[#allocation5 + $0x498] sm:$0xff]
    %v242 = vld [vmem:[#allocation5 + $0x4a0] sm:$0xff]
    %v243 = vld [vmem:[#allocation5 + $0x4a8] sm:$0xff]
    %v244 = vld [vmem:[#allocation5 + $0x4b0] sm:$0xff]
    %v245 = vld [vmem:[#allocation5 + $0x4b8] sm:$0xff]
    %v246 = vld [vmem:[#allocation5 + $0x4c0] sm:$0xff]
    %v247 = vld [vmem:[#allocation5 + $0x4c8] sm:$0xff]
    %v248 = vld [vmem:[#allocation5 + $0x4d0] sm:$0xff]
    %v249 = vld [vmem:[#allocation5 + $0x4d8] sm:$0xff]
    %v250 = vld [vmem:[#allocation5 + $0x4e0] sm:$0xff]
    %v251 = vld [vmem:[#allocation5 + $0x4e8] sm:$0xff]
    %v252 = vld [vmem:[#allocation5 + $0x4f0] sm:$0xff]
    %v253 = vld [vmem:[#allocation5 + $0x4f8] sm:$0xff]
    %v254 = vld [vmem:[#allocation5 + $0x500] sm:$0xff]
    %v255 = vld [vmem:[#allocation5 + $0x508] sm:$0xff]
    %v256 = vld [vmem:[#allocation5 + $0x510] sm:$0xff]
    %v257 = vld [vmem:[#allocation5 + $0x518] sm:$0xff]
    %v258 = vld [vmem:[#allocation5 + $0x520] sm:$0xff]
    %v259 = vld [vmem:[#allocation5 + $0x528] sm:$0xff]
    %v260 = vld [vmem:[#allocation5 + $0x530] sm:$0xff]
    %v261 = vld [vmem:[#allocation5 + $0x538] sm:$0xff]
    %v262 = vld [vmem:[#allocation5 + $0x540] sm:$0xff]
    %v263 = vld [vmem:[#allocation5 + $0x548] sm:$0xff]
    %v264 = vld [vmem:[#allocation5 + $0x550] sm:$0xff]
    %v265 = vld [vmem:[#allocation5 + $0x558] sm:$0xff]
    %v266 = vld [vmem:[#allocation5 + $0x560] sm:$0xff]
    %v267 = vld [vmem:[#allocation5 + $0x568] sm:$0xff]
    %v268 = vld [vmem:[#allocation5 + $0x570] sm:$0xff]
    %v269 = vld [vmem:[#allocation5 + $0x578] sm:$0xff]
    %v270 = vld [vmem:[#allocation5 + $0x580] sm:$0xff]
    %v271 = vld [vmem:[#allocation5 + $0x588] sm:$0xff]
    %v272 = vld [vmem:[#allocation5 + $0x590] sm:$0xff]
    %v273 = vld [vmem:[#allocation5 + $0x598] sm:$0xff]
    %v274 = vld [vmem:[#allocation5 + $0x5a0] sm:$0xff]
    %v275 = vld [vmem:[#allocation5 + $0x5a8] sm:$0xff]
    %v276 = vld [vmem:[#allocation5 + $0x5b0] sm:$0xff]
    %v277 = vld [vmem:[#allocation5 + $0x5b8] sm:$0xff]
    %v278 = vld [vmem:[#allocation5 + $0x5c0] sm:$0xff]
    %v279 = vld [vmem:[#allocation5 + $0x5c8] sm:$0xff]
    %v280 = vld [vmem:[#allocation5 + $0x5d0] sm:$0xff]
    %v281 = vld [vmem:[#allocation5 + $0x5d8] sm:$0xff]
    %v282 = vld [vmem:[#allocation5 + $0x5e0] sm:$0xff]
    %v283 = vld [vmem:[#allocation5 + $0x5e8] sm:$0xff]
    %v284 = vld [vmem:[#allocation5 + $0x5f0] sm:$0xff]
    %v285 = vld [vmem:[#allocation5 + $0x5f8] sm:$0xff]
    %v286 = vld [vmem:[#allocation5 + $0x600] sm:$0xff]
    %v287 = vld [vmem:[#allocation5 + $0x608] sm:$0xff]
    %v288 = vld [vmem:[#allocation5 + $0x610] sm:$0xff]
    %v289 = vld [vmem:[#allocation5 + $0x618] sm:$0xff]
    %v290 = vld [vmem:[%s2] sm:$0xf]
    %v292 = vlaneseq
    %v293 = vshrl.u32 %v292, 7
    %v294 = vsub.s32 0, %v293
    %v295 = vrot.slane %v290, %v294
    %v296 = vlaneseq
    %v297 = vshrl.u32 %v296, 7
    %v298 = vsub.s32 1, %v297
    %v299 = vrot.slane %v290, %v298
    %v300 = vlaneseq
    %v301 = vshrl.u32 %v300, 7
    %v302 = vsub.s32 2, %v301
    %v303 = vrot.slane %v290, %v302
    %v304 = vlaneseq
    %v305 = vshrl.u32 %v304, 7
    %v306 = vsub.s32 3, %v305
    %v307 = vrot.slane %v290, %v306
    %v508 = vunpack.c.l.b16 %v94
    %v509 = vunpack.c.h.b16 %v94
    %v510 = vunpack.c.l.b16 %v95
    %v511 = vunpack.c.h.b16 %v95
    %v512 = vunpack.c.l.b16 %v96
    %v513 = vunpack.c.h.b16 %v96
    %v514 = vunpack.c.l.b16 %v97
    %v515 = vunpack.c.h.b16 %v97
    %v516 = vunpack.c.l.b16 %v98
    %v517 = vunpack.c.h.b16 %v98
    %v518 = vunpack.c.l.b16 %v99
    %v519 = vunpack.c.h.b16 %v99
    %v520 = vunpack.c.l.b16 %v100
    %v521 = vunpack.c.h.b16 %v100
    %v522 = vunpack.c.l.b16 %v101
    %v523 = vunpack.c.h.b16 %v101
    %v524 = vunpack.c.l.b16 %v102
    %v525 = vunpack.c.h.b16 %v102
    %v526 = vunpack.c.l.b16 %v103
    %v527 = vunpack.c.h.b16 %v103
    %v528 = vunpack.c.l.b16 %v104
    %v529 = vunpack.c.h.b16 %v104
    %v530 = vunpack.c.l.b16 %v105
    %v531 = vunpack.c.h.b16 %v105
    %v532 = vunpack.c.l.b16 %v106
    %v533 = vunpack.c.h.b16 %v106
    %v534 = vunpack.c.l.b16 %v107
    %v535 = vunpack.c.h.b16 %v107
    %v536 = vunpack.c.l.b16 %v108
    %v537 = vunpack.c.h.b16 %v108
    %v538 = vunpack.c.l.b16 %v109
    %v539 = vunpack.c.h.b16 %v109
    %v540 = vunpack.c.l.b16 %v110
    %v541 = vunpack.c.h.b16 %v110
    %v542 = vunpack.c.l.b16 %v111
    %v543 = vunpack.c.h.b16 %v111
    %v544 = vunpack.c.l.b16 %v112
    %v545 = vunpack.c.h.b16 %v112
    %v546 = vunpack.c.l.b16 %v113
    %v547 = vunpack.c.h.b16 %v113
    %v548 = vunpack.c.l.b16 %v114
    %v549 = vunpack.c.h.b16 %v114
    %v550 = vunpack.c.l.b16 %v115
    %v551 = vunpack.c.h.b16 %v115
    %v552 = vunpack.c.l.b16 %v116
    %v553 = vunpack.c.h.b16 %v116
    %v554 = vunpack.c.l.b16 %v117
    %v555 = vunpack.c.h.b16 %v117
    %v556 = vunpack.c.l.b16 %v118
    %v557 = vunpack.c.h.b16 %v118
    %v558 = vunpack.c.l.b16 %v119
    %v559 = vunpack.c.h.b16 %v119
    %v560 = vunpack.c.l.b16 %v120
    %v561 = vunpack.c.h.b16 %v120
    %v562 = vunpack.c.l.b16 %v121
    %v563 = vunpack.c.h.b16 %v121
    %v564 = vunpack.c.l.b16 %v122
    %v565 = vunpack.c.h.b16 %v122
    %v566 = vunpack.c.l.b16 %v123
    %v567 = vunpack.c.h.b16 %v123
    %v568 = vunpack.c.l.b16 %v124
    %v569 = vunpack.c.h.b16 %v124
    %v570 = vunpack.c.l.b16 %v125
    %v571 = vunpack.c.h.b16 %v125
    %v572 = vunpack.c.l.b16 %v126
    %v573 = vunpack.c.h.b16 %v126
    %v574 = vunpack.c.l.b16 %v127
    %v575 = vunpack.c.h.b16 %v127
    %v576 = vunpack.c.l.b16 %v128
    %v577 = vunpack.c.h.b16 %v128
    %v578 = vunpack.c.l.b16 %v129
    %v579 = vunpack.c.h.b16 %v129
    %v580 = vunpack.c.l.b16 %v130
    %v581 = vunpack.c.h.b16 %v130
    %v582 = vunpack.c.l.b16 %v131
    %v583 = vunpack.c.h.b16 %v131
    %v584 = vunpack.c.l.b16 %v132
    %v585 = vunpack.c.h.b16 %v132
    %v586 = vunpack.c.l.b16 %v133
    %v587 = vunpack.c.h.b16 %v133
    %v588 = vunpack.c.l.b16 %v134
    %v589 = vunpack.c.h.b16 %v134
    %v590 = vunpack.c.l.b16 %v135
    %v591 = vunpack.c.h.b16 %v135
    %v592 = vunpack.c.l.b16 %v136
    %v593 = vunpack.c.h.b16 %v136
    %v594 = vunpack.c.l.b16 %v137
    %v595 = vunpack.c.h.b16 %v137
    %v596 = vunpack.c.l.b16 %v138
    %v597 = vunpack.c.h.b16 %v138
    %v598 = vunpack.c.l.b16 %v139
    %v599 = vunpack.c.h.b16 %v139
    %v600 = vunpack.c.l.b16 %v140
    %v601 = vunpack.c.h.b16 %v140
    %v602 = vunpack.c.l.b16 %v141
    %v603 = vunpack.c.h.b16 %v141
    %v604 = vunpack.c.l.b16 %v142
    %v605 = vunpack.c.h.b16 %v142
    %v606 = vunpack.c.l.b16 %v143
    %v607 = vunpack.c.h.b16 %v143
    %v608 = vunpack.c.l.b16 %v144
    %v609 = vunpack.c.h.b16 %v144
    %v610 = vunpack.c.l.b16 %v145
    %v611 = vunpack.c.h.b16 %v145
    %v612 = vunpack.c.l.b16 %v146
    %v613 = vunpack.c.h.b16 %v146
    %v614 = vunpack.c.l.b16 %v147
    %v615 = vunpack.c.h.b16 %v147
    %v616 = vunpack.c.l.b16 %v148
    %v617 = vunpack.c.h.b16 %v148
    %v618 = vunpack.c.l.b16 %v149
    %v619 = vunpack.c.h.b16 %v149
    %v620 = vunpack.c.l.b16 %v150
    %v621 = vunpack.c.h.b16 %v150
    %v622 = vunpack.c.l.b16 %v151
    %v623 = vunpack.c.h.b16 %v151
    %v624 = vunpack.c.l.b16 %v152
    %v625 = vunpack.c.h.b16 %v152
    %v626 = vunpack.c.l.b16 %v153
    %v627 = vunpack.c.h.b16 %v153
    %v628 = vunpack.c.l.b16 %v154
    %v629 = vunpack.c.h.b16 %v154
    %v630 = vunpack.c.l.b16 %v155
    %v631 = vunpack.c.h.b16 %v155
    %v632 = vunpack.c.l.b16 %v156
    %v633 = vunpack.c.h.b16 %v156
    %v634 = vunpack.c.l.b16 %v157
    %v635 = vunpack.c.h.b16 %v157
    %v636 = vunpack.c.l.b16 %v158
    %v637 = vunpack.c.h.b16 %v158
    %v638 = vunpack.c.l.b16 %v159
    %v639 = vunpack.c.h.b16 %v159
    %v640 = vunpack.c.l.b16 %v160
    %v641 = vunpack.c.h.b16 %v160
    %v642 = vunpack.c.l.b16 %v161
    %v643 = vunpack.c.h.b16 %v161
    %v644 = vunpack.c.l.b16 %v162
    %v645 = vunpack.c.h.b16 %v162
    %v646 = vunpack.c.l.b16 %v163
    %v647 = vunpack.c.h.b16 %v163
    %v648 = vunpack.c.l.b16 %v164
    %v649 = vunpack.c.h.b16 %v164
    %v650 = vunpack.c.l.b16 %v165
    %v651 = vunpack.c.h.b16 %v165
    %v652 = vunpack.c.l.b16 %v166
    %v653 = vunpack.c.h.b16 %v166
    %v654 = vunpack.c.l.b16 %v167
    %v655 = vunpack.c.h.b16 %v167
    %v656 = vunpack.c.l.b16 %v168
    %v657 = vunpack.c.h.b16 %v168
    %v658 = vunpack.c.l.b16 %v169
    %v659 = vunpack.c.h.b16 %v169
    %v660 = vunpack.c.l.b16 %v170
    %v661 = vunpack.c.h.b16 %v170
    %v662 = vunpack.c.l.b16 %v171
    %v663 = vunpack.c.h.b16 %v171
    %v664 = vunpack.c.l.b16 %v172
    %v665 = vunpack.c.h.b16 %v172
    %v666 = vunpack.c.l.b16 %v173
    %v667 = vunpack.c.h.b16 %v173
    %v668 = vunpack.c.l.b16 %v174
    %v669 = vunpack.c.h.b16 %v174
    %v670 = vunpack.c.l.b16 %v175
    %v671 = vunpack.c.h.b16 %v175
    %v672 = vunpack.c.l.b16 %v176
    %v673 = vunpack.c.h.b16 %v176
    %v674 = vunpack.c.l.b16 %v177
    %v675 = vunpack.c.h.b16 %v177
    %v676 = vunpack.c.l.b16 %v178
    %v677 = vunpack.c.h.b16 %v178
    %v678 = vunpack.c.l.b16 %v179
    %v679 = vunpack.c.h.b16 %v179
    %v680 = vunpack.c.l.b16 %v180
    %v681 = vunpack.c.h.b16 %v180
    %v682 = vunpack.c.l.b16 %v181
    %v683 = vunpack.c.h.b16 %v181
    %v684 = vunpack.c.l.b16 %v182
    %v685 = vunpack.c.h.b16 %v182
    %v686 = vunpack.c.l.b16 %v183
    %v687 = vunpack.c.h.b16 %v183
    %v688 = vunpack.c.l.b16 %v184
    %v689 = vunpack.c.h.b16 %v184
    %v690 = vunpack.c.l.b16 %v185
    %v691 = vunpack.c.h.b16 %v185
    %v692 = vunpack.c.l.b16 %v186
    %v693 = vunpack.c.h.b16 %v186
    %v694 = vunpack.c.l.b16 %v187
    %v695 = vunpack.c.h.b16 %v187
    %v696 = vunpack.c.l.b16 %v188
    %v697 = vunpack.c.h.b16 %v188
    %v698 = vunpack.c.l.b16 %v189
    %v699 = vunpack.c.h.b16 %v189
    %v700 = vunpack.c.l.b16 %v190
    %v701 = vunpack.c.h.b16 %v190
    %v702 = vunpack.c.l.b16 %v191
    %v703 = vunpack.c.h.b16 %v191
    %v704 = vunpack.c.l.b16 %v192
    %v705 = vunpack.c.h.b16 %v192
    %v706 = vunpack.c.l.b16 %v193
    %v707 = vunpack.c.h.b16 %v193
    %v708 = vunpack.c.l.b16 %v194
    %v709 = vunpack.c.h.b16 %v194
    %v710 = vunpack.c.l.b16 %v195
    %v711 = vunpack.c.h.b16 %v195
    %v712 = vunpack.c.l.b16 %v196
    %v713 = vunpack.c.h.b16 %v196
    %v714 = vunpack.c.l.b16 %v197
    %v715 = vunpack.c.h.b16 %v197
    %v716 = vunpack.c.l.b16 %v198
    %v717 = vunpack.c.h.b16 %v198
    %v718 = vunpack.c.l.b16 %v199
    %v719 = vunpack.c.h.b16 %v199
    %v720 = vunpack.c.l.b16 %v200
    %v721 = vunpack.c.h.b16 %v200
    %v722 = vunpack.c.l.b16 %v201
    %v723 = vunpack.c.h.b16 %v201
    %v724 = vunpack.c.l.b16 %v202
    %v725 = vunpack.c.h.b16 %v202
    %v726 = vunpack.c.l.b16 %v203
    %v727 = vunpack.c.h.b16 %v203
    %v728 = vunpack.c.l.b16 %v204
    %v729 = vunpack.c.h.b16 %v204
    %v730 = vunpack.c.l.b16 %v205
    %v731 = vunpack.c.h.b16 %v205
    %v732 = vunpack.c.l.b16 %v206
    %v733 = vunpack.c.h.b16 %v206
    %v734 = vunpack.c.l.b16 %v207
    %v735 = vunpack.c.h.b16 %v207
    %v736 = vunpack.c.l.b16 %v208
    %v737 = vunpack.c.h.b16 %v208
    %v738 = vunpack.c.l.b16 %v209
    %v739 = vunpack.c.h.b16 %v209
    %v740 = vunpack.c.l.b16 %v210
    %v741 = vunpack.c.h.b16 %v210
    %v742 = vunpack.c.l.b16 %v211
    %v743 = vunpack.c.h.b16 %v211
    %v744 = vunpack.c.l.b16 %v212
    %v745 = vunpack.c.h.b16 %v212
    %v746 = vunpack.c.l.b16 %v213
    %v747 = vunpack.c.h.b16 %v213
    %v748 = vunpack.c.l.b16 %v214
    %v749 = vunpack.c.h.b16 %v214
    %v750 = vunpack.c.l.b16 %v215
    %v751 = vunpack.c.h.b16 %v215
    %v752 = vunpack.c.l.b16 %v216
    %v753 = vunpack.c.h.b16 %v216
    %v754 = vunpack.c.l.b16 %v217
    %v755 = vunpack.c.h.b16 %v217
    %v756 = vunpack.c.l.b16 %v218
    %v757 = vunpack.c.h.b16 %v218
    %v758 = vunpack.c.l.b16 %v219
    %v759 = vunpack.c.h.b16 %v219
    %v760 = vunpack.c.l.b16 %v220
    %v761 = vunpack.c.h.b16 %v220
    %v762 = vunpack.c.l.b16 %v221
    %v763 = vunpack.c.h.b16 %v221
    %v764 = vunpack.c.l.b16 %v222
    %v765 = vunpack.c.h.b16 %v222
    %v766 = vunpack.c.l.b16 %v223
    %v767 = vunpack.c.h.b16 %v223
    %v768 = vunpack.c.l.b16 %v224
    %v769 = vunpack.c.h.b16 %v224
    %v770 = vunpack.c.l.b16 %v225
    %v771 = vunpack.c.h.b16 %v225
    %v772 = vunpack.c.l.b16 %v226
    %v773 = vunpack.c.h.b16 %v226
    %v774 = vunpack.c.l.b16 %v227
    %v775 = vunpack.c.h.b16 %v227
    %v776 = vunpack.c.l.b16 %v228
    %v777 = vunpack.c.h.b16 %v228
    %v778 = vunpack.c.l.b16 %v229
    %v779 = vunpack.c.h.b16 %v229
    %v780 = vunpack.c.l.b16 %v230
    %v781 = vunpack.c.h.b16 %v230
    %v782 = vunpack.c.l.b16 %v231
    %v783 = vunpack.c.h.b16 %v231
    %v784 = vunpack.c.l.b16 %v232
    %v785 = vunpack.c.h.b16 %v232
    %v786 = vunpack.c.l.b16 %v233
    %v787 = vunpack.c.h.b16 %v233
    %v788 = vunpack.c.l.b16 %v234
    %v789 = vunpack.c.h.b16 %v234
    %v790 = vunpack.c.l.b16 %v235
    %v791 = vunpack.c.h.b16 %v235
    %v792 = vunpack.c.l.b16 %v236
    %v793 = vunpack.c.h.b16 %v236
    %v794 = vunpack.c.l.b16 %v237
    %v795 = vunpack.c.h.b16 %v237
    %v796 = vunpack.c.l.b16 %v238
    %v797 = vunpack.c.h.b16 %v238
    %v798 = vunpack.c.l.b16 %v239
    %v799 = vunpack.c.h.b16 %v239
    %v800 = vunpack.c.l.b16 %v240
    %v801 = vunpack.c.h.b16 %v240
    %v802 = vunpack.c.l.b16 %v241
    %v803 = vunpack.c.h.b16 %v241
    %v804 = vunpack.c.l.b16 %v242
    %v805 = vunpack.c.h.b16 %v242
    %v806 = vunpack.c.l.b16 %v243
    %v807 = vunpack.c.h.b16 %v243
    %v808 = vunpack.c.l.b16 %v244
    %v809 = vunpack.c.h.b16 %v244
    %v810 = vunpack.c.l.b16 %v245
    %v811 = vunpack.c.h.b16 %v245
    %v812 = vunpack.c.l.b16 %v246
    %v813 = vunpack.c.h.b16 %v246
    %v814 = vunpack.c.l.b16 %v247
    %v815 = vunpack.c.h.b16 %v247
    %v816 = vunpack.c.l.b16 %v248
    %v817 = vunpack.c.h.b16 %v248
    %v818 = vunpack.c.l.b16 %v249
    %v819 = vunpack.c.h.b16 %v249
    %v820 = vunpack.c.l.b16 %v250
    %v821 = vunpack.c.h.b16 %v250
    %v822 = vunpack.c.l.b16 %v251
    %v823 = vunpack.c.h.b16 %v251
    %v824 = vunpack.c.l.b16 %v252
    %v825 = vunpack.c.h.b16 %v252
    %v826 = vunpack.c.l.b16 %v253
    %v827 = vunpack.c.h.b16 %v253
    %v828 = vunpack.c.l.b16 %v254
    %v829 = vunpack.c.h.b16 %v254
    %v830 = vunpack.c.l.b16 %v255
    %v831 = vunpack.c.h.b16 %v255
    %v832 = vunpack.c.l.b16 %v256
    %v833 = vunpack.c.h.b16 %v256
    %v834 = vunpack.c.l.b16 %v257
    %v835 = vunpack.c.h.b16 %v257
    %v836 = vunpack.c.l.b16 %v258
    %v837 = vunpack.c.h.b16 %v258
    %v838 = vunpack.c.l.b16 %v259
    %v839 = vunpack.c.h.b16 %v259
    %v840 = vunpack.c.l.b16 %v260
    %v841 = vunpack.c.h.b16 %v260
    %v842 = vunpack.c.l.b16 %v261
    %v843 = vunpack.c.h.b16 %v261
    %v844 = vunpack.c.l.b16 %v262
    %v845 = vunpack.c.h.b16 %v262
    %v846 = vunpack.c.l.b16 %v263
    %v847 = vunpack.c.h.b16 %v263
    %v848 = vunpack.c.l.b16 %v264
    %v849 = vunpack.c.h.b16 %v264
    %v850 = vunpack.c.l.b16 %v265
    %v851 = vunpack.c.h.b16 %v265
    %v852 = vunpack.c.l.b16 %v266
    %v853 = vunpack.c.h.b16 %v266
    %v854 = vunpack.c.l.b16 %v267
    %v855 = vunpack.c.h.b16 %v267
    %v856 = vunpack.c.l.b16 %v268
    %v857 = vunpack.c.h.b16 %v268
    %v858 = vunpack.c.l.b16 %v269
    %v859 = vunpack.c.h.b16 %v269
    %v860 = vunpack.c.l.b16 %v270
    %v861 = vunpack.c.h.b16 %v270
    %v862 = vunpack.c.l.b16 %v271
    %v863 = vunpack.c.h.b16 %v271
    %v864 = vunpack.c.l.b16 %v272
    %v865 = vunpack.c.h.b16 %v272
    %v866 = vunpack.c.l.b16 %v273
    %v867 = vunpack.c.h.b16 %v273
    %v868 = vunpack.c.l.b16 %v274
    %v869 = vunpack.c.h.b16 %v274
    %v870 = vunpack.c.l.b16 %v275
    %v871 = vunpack.c.h.b16 %v275
    %v872 = vunpack.c.l.b16 %v276
    %v873 = vunpack.c.h.b16 %v276
    %v874 = vunpack.c.l.b16 %v277
    %v875 = vunpack.c.h.b16 %v277
    %v876 = vunpack.c.l.b16 %v278
    %v877 = vunpack.c.h.b16 %v278
    %v878 = vunpack.c.l.b16 %v279
    %v879 = vunpack.c.h.b16 %v279
    %v880 = vunpack.c.l.b16 %v280
    %v881 = vunpack.c.h.b16 %v280
    %v882 = vunpack.c.l.b16 %v281
    %v883 = vunpack.c.h.b16 %v281
    %v884 = vunpack.c.l.b16 %v282
    %v885 = vunpack.c.h.b16 %v282
    %v886 = vunpack.c.l.b16 %v283
    %v887 = vunpack.c.h.b16 %v283
    %v888 = vunpack.c.l.b16 %v284
    %v889 = vunpack.c.h.b16 %v284
    %v890 = vunpack.c.l.b16 %v285
    %v891 = vunpack.c.h.b16 %v285
    %v892 = vunpack.c.l.b16 %v286
    %v893 = vunpack.c.h.b16 %v286
    %v894 = vunpack.c.l.b16 %v287
    %v895 = vunpack.c.h.b16 %v287
    %v896 = vunpack.c.l.b16 %v288
    %v897 = vunpack.c.h.b16 %v288
    %v898 = vunpack.c.l.b16 %v289
    %v899 = vunpack.c.h.b16 %v289
    %v900 = vpack.c.b16 %v512, %v508
    %v901 = vpack.c.b16 %v513, %v509
    %v902 = vpack.c.b16 %v514, %v510
    %v903 = vpack.c.b16 %v515, %v511
    %v904 = vpack.c.b16 %v520, %v516
    %v905 = vpack.c.b16 %v521, %v517
    %v906 = vpack.c.b16 %v522, %v518
    %v907 = vpack.c.b16 %v523, %v519
    %v908 = vpack.c.b16 %v528, %v524
    %v909 = vpack.c.b16 %v529, %v525
    %v910 = vpack.c.b16 %v530, %v526
    %v911 = vpack.c.b16 %v531, %v527
    %v912 = vpack.c.b16 %v536, %v532
    %v913 = vpack.c.b16 %v537, %v533
    %v914 = vpack.c.b16 %v538, %v534
    %v915 = vpack.c.b16 %v539, %v535
    %v916 = vpack.c.b16 %v544, %v540
    %v917 = vpack.c.b16 %v545, %v541
    %v918 = vpack.c.b16 %v546, %v542
    %v919 = vpack.c.b16 %v547, %v543
    %v920 = vpack.c.b16 %v552, %v548
    %v921 = vpack.c.b16 %v553, %v549
    %v922 = vpack.c.b16 %v554, %v550
    %v923 = vpack.c.b16 %v555, %v551
    %v924 = vpack.c.b16 %v560, %v556
    %v925 = vpack.c.b16 %v561, %v557
    %v926 = vpack.c.b16 %v562, %v558
    %v927 = vpack.c.b16 %v563, %v559
    %v928 = vpack.c.b16 %v568, %v564
    %v929 = vpack.c.b16 %v569, %v565
    %v930 = vpack.c.b16 %v570, %v566
    %v931 = vpack.c.b16 %v571, %v567
    %v932 = vpack.c.b16 %v576, %v572
    %v933 = vpack.c.b16 %v577, %v573
    %v934 = vpack.c.b16 %v578, %v574
    %v935 = vpack.c.b16 %v579, %v575
    %v936 = vpack.c.b16 %v584, %v580
    %v937 = vpack.c.b16 %v585, %v581
    %v938 = vpack.c.b16 %v586, %v582
    %v939 = vpack.c.b16 %v587, %v583
    %v940 = vpack.c.b16 %v592, %v588
    %v941 = vpack.c.b16 %v593, %v589
    %v942 = vpack.c.b16 %v594, %v590
    %v943 = vpack.c.b16 %v595, %v591
    %v944 = vpack.c.b16 %v600, %v596
    %v945 = vpack.c.b16 %v601, %v597
    %v946 = vpack.c.b16 %v602, %v598
    %v947 = vpack.c.b16 %v603, %v599
    %v948 = vpack.c.b16 %v608, %v604
    %v949 = vpack.c.b16 %v609, %v605
    %v950 = vpack.c.b16 %v610, %v606
    %v951 = vpack.c.b16 %v611, %v607
    %v952 = vpack.c.b16 %v616, %v612
    %v953 = vpack.c.b16 %v617, %v613
    %v954 = vpack.c.b16 %v618, %v614
    %v955 = vpack.c.b16 %v619, %v615
    %v956 = vpack.c.b16 %v624, %v620
    %v957 = vpack.c.b16 %v625, %v621
    %v958 = vpack.c.b16 %v626, %v622
    %v959 = vpack.c.b16 %v627, %v623
    %v960 = vpack.c.b16 %v632, %v628
    %v961 = vpack.c.b16 %v633, %v629
    %v962 = vpack.c.b16 %v634, %v630
    %v963 = vpack.c.b16 %v635, %v631
    %v964 = vpack.c.b16 %v640, %v636
    %v965 = vpack.c.b16 %v641, %v637
    %v966 = vpack.c.b16 %v642, %v638
    %v967 = vpack.c.b16 %v643, %v639
    %v968 = vpack.c.b16 %v648, %v644
    %v969 = vpack.c.b16 %v649, %v645
    %v970 = vpack.c.b16 %v650, %v646
    %v971 = vpack.c.b16 %v651, %v647
    %v972 = vpack.c.b16 %v656, %v652
    %v973 = vpack.c.b16 %v657, %v653
    %v974 = vpack.c.b16 %v658, %v654
    %v975 = vpack.c.b16 %v659, %v655
    %v976 = vpack.c.b16 %v664, %v660
    %v977 = vpack.c.b16 %v665, %v661
    %v978 = vpack.c.b16 %v666, %v662
    %v979 = vpack.c.b16 %v667, %v663
    %v980 = vpack.c.b16 %v672, %v668
    %v981 = vpack.c.b16 %v673, %v669
    %v982 = vpack.c.b16 %v674, %v670
    %v983 = vpack.c.b16 %v675, %v671
    %v984 = vpack.c.b16 %v680, %v676
    %v985 = vpack.c.b16 %v681, %v677
    %v986 = vpack.c.b16 %v682, %v678
    %v987 = vpack.c.b16 %v683, %v679
    %v988 = vpack.c.b16 %v688, %v684
    %v989 = vpack.c.b16 %v689, %v685
    %v990 = vpack.c.b16 %v690, %v686
    %v991 = vpack.c.b16 %v691, %v687
    %v992 = vpack.c.b16 %v696, %v692
    %v993 = vpack.c.b16 %v697, %v693
    %v994 = vpack.c.b16 %v698, %v694
    %v995 = vpack.c.b16 %v699, %v695
    %v996 = vpack.c.b16 %v704, %v700
    %v997 = vpack.c.b16 %v705, %v701
    %v998 = vpack.c.b16 %v706, %v702
    %v999 = vpack.c.b16 %v707, %v703
    %v1000 = vpack.c.b16 %v712, %v708
    %v1001 = vpack.c.b16 %v713, %v709
    %v1002 = vpack.c.b16 %v714, %v710
    %v1003 = vpack.c.b16 %v715, %v711
    %v1004 = vpack.c.b16 %v720, %v716
    %v1005 = vpack.c.b16 %v721, %v717
    %v1006 = vpack.c.b16 %v722, %v718
    %v1007 = vpack.c.b16 %v723, %v719
    %v1008 = vpack.c.b16 %v728, %v724
    %v1009 = vpack.c.b16 %v729, %v725
    %v1010 = vpack.c.b16 %v730, %v726
    %v1011 = vpack.c.b16 %v731, %v727
    %v1012 = vpack.c.b16 %v736, %v732
    %v1013 = vpack.c.b16 %v737, %v733
    %v1014 = vpack.c.b16 %v738, %v734
    %v1015 = vpack.c.b16 %v739, %v735
    %v1016 = vpack.c.b16 %v744, %v740
    %v1017 = vpack.c.b16 %v745, %v741
    %v1018 = vpack.c.b16 %v746, %v742
    %v1019 = vpack.c.b16 %v747, %v743
    %v1020 = vpack.c.b16 %v752, %v748
    %v1021 = vpack.c.b16 %v753, %v749
    %v1022 = vpack.c.b16 %v754, %v750
    %v1023 = vpack.c.b16 %v755, %v751
    %v1024 = vpack.c.b16 %v760, %v756
    %v1025 = vpack.c.b16 %v761, %v757
    %v1026 = vpack.c.b16 %v762, %v758
    %v1027 = vpack.c.b16 %v763, %v759
    %v1028 = vpack.c.b16 %v768, %v764
    %v1029 = vpack.c.b16 %v769, %v765
    %v1030 = vpack.c.b16 %v770, %v766
    %v1031 = vpack.c.b16 %v771, %v767
    %v1032 = vpack.c.b16 %v776, %v772
    %v1033 = vpack.c.b16 %v777, %v773
    %v1034 = vpack.c.b16 %v778, %v774
    %v1035 = vpack.c.b16 %v779, %v775
    %v1036 = vpack.c.b16 %v784, %v780
    %v1037 = vpack.c.b16 %v785, %v781
    %v1038 = vpack.c.b16 %v786, %v782
    %v1039 = vpack.c.b16 %v787, %v783
    %v1040 = vpack.c.b16 %v792, %v788
    %v1041 = vpack.c.b16 %v793, %v789
    %v1042 = vpack.c.b16 %v794, %v790
    %v1043 = vpack.c.b16 %v795, %v791
    %v1044 = vpack.c.b16 %v800, %v796
    %v1045 = vpack.c.b16 %v801, %v797
    %v1046 = vpack.c.b16 %v802, %v798
    %v1047 = vpack.c.b16 %v803, %v799
    %v1048 = vpack.c.b16 %v808, %v804
    %v1049 = vpack.c.b16 %v809, %v805
    %v1050 = vpack.c.b16 %v810, %v806
    %v1051 = vpack.c.b16 %v811, %v807
    %v1052 = vpack.c.b16 %v816, %v812
    %v1053 = vpack.c.b16 %v817, %v813
    %v1054 = vpack.c.b16 %v818, %v814
    %v1055 = vpack.c.b16 %v819, %v815
    %v1056 = vpack.c.b16 %v824, %v820
    %v1057 = vpack.c.b16 %v825, %v821
    %v1058 = vpack.c.b16 %v826, %v822
    %v1059 = vpack.c.b16 %v827, %v823
    %v1060 = vpack.c.b16 %v832, %v828
    %v1061 = vpack.c.b16 %v833, %v829
    %v1062 = vpack.c.b16 %v834, %v830
    %v1063 = vpack.c.b16 %v835, %v831
    %v1064 = vpack.c.b16 %v840, %v836
    %v1065 = vpack.c.b16 %v841, %v837
    %v1066 = vpack.c.b16 %v842, %v838
    %v1067 = vpack.c.b16 %v843, %v839
    %v1068 = vpack.c.b16 %v848, %v844
    %v1069 = vpack.c.b16 %v849, %v845
    %v1070 = vpack.c.b16 %v850, %v846
    %v1071 = vpack.c.b16 %v851, %v847
    %v1072 = vpack.c.b16 %v856, %v852
    %v1073 = vpack.c.b16 %v857, %v853
    %v1074 = vpack.c.b16 %v858, %v854
    %v1075 = vpack.c.b16 %v859, %v855
    %v1076 = vpack.c.b16 %v864, %v860
    %v1077 = vpack.c.b16 %v865, %v861
    %v1078 = vpack.c.b16 %v866, %v862
    %v1079 = vpack.c.b16 %v867, %v863
    %v1080 = vpack.c.b16 %v872, %v868
    %v1081 = vpack.c.b16 %v873, %v869
    %v1082 = vpack.c.b16 %v874, %v870
    %v1083 = vpack.c.b16 %v875, %v871
    %v1084 = vpack.c.b16 %v880, %v876
    %v1085 = vpack.c.b16 %v881, %v877
    %v1086 = vpack.c.b16 %v882, %v878
    %v1087 = vpack.c.b16 %v883, %v879
    %v1088 = vpack.c.b16 %v888, %v884
    %v1089 = vpack.c.b16 %v889, %v885
    %v1090 = vpack.c.b16 %v890, %v886
    %v1091 = vpack.c.b16 %v891, %v887
    %v1092 = vpack.c.b16 %v896, %v892
    %v1093 = vpack.c.b16 %v897, %v893
    %v1094 = vpack.c.b16 %v898, %v894
    %v1095 = vpack.c.b16 %v899, %v895
    %vm1292 = vcmask 130048
    %v1294 = vsel %vm1292, %v93, 0
    %1296 = vmatprep.subr.bf16.mxu0 %v901
    %1297 = vmatpush1.bf16.msra.mxu0 %v900
    %1298 = vmatprep.subr.bf16.mxu0 %v905
    %1299 = vmatpush1.bf16.msra.mxu0 %v904
    %1300 = vmatprep.subr.bf16.mxu0 %v909
    %1301 = vmatpush1.bf16.msra.mxu0 %v908
    %1302 = vmatprep.subr.bf16.mxu0 %v913
    %1303 = vmatpush1.bf16.msra.mxu0 %v912
    %1304 = vmatprep.subr.bf16.mxu0 %v917
    %1305 = vmatpush1.bf16.msra.mxu0 %v916
    %1306 = vmatprep.subr.bf16.mxu0 %v921
    %1307 = vmatpush1.bf16.msra.mxu0 %v920
    %1308 = vmatprep.subr.bf16.mxu0 %v925
    %1309 = vmatpush1.bf16.msra.mxu0 %v924
    %1310 = vmatprep.subr.bf16.mxu0 %v929
    %1311 = vmatpush1.bf16.msra.mxu0 %v928
    %1312 = vmatprep.subr.bf16.mxu0 %v933
    %1313 = vmatpush1.bf16.msra.mxu0 %v932
    %1314 = vmatprep.subr.bf16.mxu0 %v937
    %1315 = vmatpush1.bf16.msra.mxu0 %v936
    %1316 = vmatprep.subr.bf16.mxu0 %v941
    %1317 = vmatpush1.bf16.msra.mxu0 %v940
    %1318 = vmatprep.subr.bf16.mxu0 %v945
    %1319 = vmatpush1.bf16.msra.mxu0 %v944
    %1320 = vmatprep.subr.bf16.mxu0 %v949
    %1321 = vmatpush1.bf16.msra.mxu0 %v948
    %1322 = vmatprep.subr.bf16.mxu0 %v953
    %1323 = vmatpush1.bf16.msra.mxu0 %v952
    %1324 = vmatprep.subr.bf16.mxu0 %v957
    %1325 = vmatpush1.bf16.msra.mxu0 %v956
    %1326 = vmatprep.subr.bf16.mxu0 %v961
    %1327 = vmatpush1.bf16.msra.mxu0 %v960
    %1328 = vmatprep.mubr.bf16.mxu0 %v88
    %1329 = vmatmul.mubr.bf16.gmra.mrb[0].mxu0 %v87
    %v1330 = vpop.f32.mrb[0].mxu0
    %v1331 = vadd.f32 %v295, %v1330
    %v1332 = vpop.f32.mrb[0].mxu0
    %v1333 = vadd.f32 %v299, %v1332
    %v1334 = vpop.f32.mrb[0].mxu0
    %v1335 = vpop.f32.mrb[0].mxu0
    %1336 = vdwg.mxu0
    %1337 = vmatprep.subr.bf16.mxu0 %v965
    %1338 = vmatpush1.bf16.msra.mxu0 %v964
    %1339 = vmatprep.subr.bf16.mxu0 %v969
    %1340 = vmatpush1.bf16.msra.mxu0 %v968
    %1341 = vmatprep.subr.bf16.mxu0 %v973
    %1342 = vmatpush1.bf16.msra.mxu0 %v972
    %1343 = vmatprep.subr.bf16.mxu0 %v977
    %1344 = vmatpush1.bf16.msra.mxu0 %v976
    %1345 = vmatprep.subr.bf16.mxu0 %v981
    %1346 = vmatpush1.bf16.msra.mxu0 %v980
    %1347 = vmatprep.subr.bf16.mxu0 %v985
    %1348 = vmatpush1.bf16.msra.mxu0 %v984
    %1349 = vmatprep.subr.bf16.mxu0 %v989
    %1350 = vmatpush1.bf16.msra.mxu0 %v988
    %1351 = vmatprep.subr.bf16.mxu0 %v993
    %1352 = vmatpush1.bf16.msra.mxu0 %v992
    %1353 = vmatprep.subr.bf16.mxu0 %v997
    %1354 = vmatpush1.bf16.msra.mxu0 %v996
    %1355 = vmatprep.subr.bf16.mxu0 %v1001
    %1356 = vmatpush1.bf16.msra.mxu0 %v1000
    %1357 = vmatprep.subr.bf16.mxu0 %v1005
    %1358 = vmatpush1.bf16.msra.mxu0 %v1004
    %1359 = vmatprep.subr.bf16.mxu0 %v1009
    %1360 = vmatpush1.bf16.msra.mxu0 %v1008
    %1361 = vmatprep.subr.bf16.mxu0 %v1013
    %1362 = vmatpush1.bf16.msra.mxu0 %v1012
    %1363 = vmatprep.subr.bf16.mxu0 %v1017
    %1364 = vmatpush1.bf16.msra.mxu0 %v1016
    %1365 = vmatprep.subr.bf16.mxu0 %v1021
    %1366 = vmatpush1.bf16.msra.mxu0 %v1020
    %1367 = vmatprep.subr.bf16.mxu0 %v1025
    %1368 = vmatpush1.bf16.msra.mxu0 %v1024
    %1369 = vmatprep.mubr.bf16.mxu0 %v90
    %1370 = vmatmul.mubr.bf16.gmra.mrb[0].mxu0 %v89
    %v1371 = vpop.f32.mrb[0].mxu0
    %v1372 = vadd.f32 %v1331, %v1371
    %v1373 = vpop.f32.mrb[0].mxu0
    %v1374 = vadd.f32 %v1333, %v1373
    %v1375 = vpop.f32.mrb[0].mxu0
    %v1376 = vpop.f32.mrb[0].mxu0
    %1377 = vdwg.mxu0
    %1378 = vmatprep.subr.bf16.mxu0 %v1029
    %1379 = vmatpush1.bf16.msra.mxu0 %v1028
    %1380 = vmatprep.subr.bf16.mxu0 %v1033
    %1381 = vmatpush1.bf16.msra.mxu0 %v1032
    %1382 = vmatprep.subr.bf16.mxu0 %v1037
    %1383 = vmatpush1.bf16.msra.mxu0 %v1036
    %1384 = vmatprep.subr.bf16.mxu0 %v1041
    %1385 = vmatpush1.bf16.msra.mxu0 %v1040
    %1386 = vmatprep.subr.bf16.mxu0 %v1045
    %1387 = vmatpush1.bf16.msra.mxu0 %v1044
    %1388 = vmatprep.subr.bf16.mxu0 %v1049
    %1389 = vmatpush1.bf16.msra.mxu0 %v1048
    %1390 = vmatprep.subr.bf16.mxu0 %v1053
    %1391 = vmatpush1.bf16.msra.mxu0 %v1052
    %1392 = vmatprep.subr.bf16.mxu0 %v1057
    %1393 = vmatpush1.bf16.msra.mxu0 %v1056
    %1394 = vmatprep.subr.bf16.mxu0 %v1061
    %1395 = vmatpush1.bf16.msra.mxu0 %v1060
    %1396 = vmatprep.subr.bf16.mxu0 %v1065
    %1397 = vmatpush1.bf16.msra.mxu0 %v1064
    %1398 = vmatprep.subr.bf16.mxu0 %v1069
    %1399 = vmatpush1.bf16.msra.mxu0 %v1068
    %1400 = vmatprep.subr.bf16.mxu0 %v1073
    %1401 = vmatpush1.bf16.msra.mxu0 %v1072
    %1402 = vmatprep.subr.bf16.mxu0 %v1077
    %1403 = vmatpush1.bf16.msra.mxu0 %v1076
    %1404 = vmatprep.subr.bf16.mxu0 %v1081
    %1405 = vmatpush1.bf16.msra.mxu0 %v1080
    %1406 = vmatprep.subr.bf16.mxu0 %v1085
    %1407 = vmatpush1.bf16.msra.mxu0 %v1084
    %1408 = vmatprep.subr.bf16.mxu0 %v1089
    %1409 = vmatpush1.bf16.msra.mxu0 %v1088
    %1410 = vmatprep.mubr.bf16.mxu0 %v92
    %1411 = vmatmul.mubr.bf16.gmra.mrb[0].mxu0 %v91
    %v1412 = vpop.f32.mrb[0].mxu0
    %v1413 = vadd.f32 %v1372, %v1412
    %v1414 = vpop.f32.mrb[0].mxu0
    %v1415 = vadd.f32 %v1374, %v1414
    %v1416 = vpop.f32.mrb[0].mxu0
    %v1417 = vpop.f32.mrb[0].mxu0
    %1418 = vdwg.mxu0
    %1419 = vmatprep.subr.bf16.mxu0 %v1093
    %1420 = vmatpush1.bf16.msra.mxu0 %v1092
    %1421 = vmatprep.subr.bf16.mxu0 0
    %1422 = vmatpush1.bf16.msra.mxu0 0
    %1423 = vmatprep.subr.bf16.mxu0 0
    %1424 = vmatpush1.bf16.msra.mxu0 0
    %1425 = vmatprep.subr.bf16.mxu0 0
    %1426 = vmatpush1.bf16.msra.mxu0 0
    %1427 = vmatprep.subr.bf16.mxu0 0
    %1428 = vmatpush1.bf16.msra.mxu0 0
    %1429 = vmatprep.subr.bf16.mxu0 0
    %1430 = vmatpush1.bf16.msra.mxu0 0
    %1431 = vmatprep.subr.bf16.mxu0 0
    %1432 = vmatpush1.bf16.msra.mxu0 0
    %1433 = vmatprep.subr.bf16.mxu0 0
    %1434 = vmatpush1.bf16.msra.mxu0 0
    %1435 = vmatprep.subr.bf16.mxu0 0
    %1436 = vmatpush1.bf16.msra.mxu0 0
    %1437 = vmatprep.subr.bf16.mxu0 0
    %1438 = vmatpush1.bf16.msra.mxu0 0
    %1439 = vmatprep.subr.bf16.mxu0 0
    %1440 = vmatpush1.bf16.msra.mxu0 0
    %1441 = vmatprep.subr.bf16.mxu0 0
    %1442 = vmatpush1.bf16.msra.mxu0 0
    %1443 = vmatprep.subr.bf16.mxu0 0
    %1444 = vmatpush1.bf16.msra.mxu0 0
    %1445 = vmatprep.subr.bf16.mxu0 0
    %1446 = vmatpush1.bf16.msra.mxu0 0
    %1447 = vmatprep.subr.bf16.mxu0 0
    %1448 = vmatpush1.bf16.msra.mxu0 0
    %1449 = vmatprep.subr.bf16.mxu0 0
    %1450 = vmatpush1.bf16.msra.mxu0 0
    %1451 = vmatprep.mubr.bf16.mxu0 0
    %1452 = vmatmul.mubr.bf16.gmra.mrb[0].mxu0 %v1294
    %v1453 = vpop.f32.mrb[0].mxu0
    %v1454 = vadd.f32 %v1413, %v1453
    %v1455 = vpop.f32.mrb[0].mxu0
    %v1456 = vadd.f32 %v1415, %v1455
    %v1457 = vpop.f32.mrb[0].mxu0
    %v1458 = vpop.f32.mrb[0].mxu0
    %1459 = vdwg.mxu0
    %1460 = vmatprep.subr.bf16.mxu0 %v903
    %1461 = vmatpush1.bf16.msra.mxu0 %v902
    %1462 = vmatprep.subr.bf16.mxu0 %v907
    %1463 = vmatpush1.bf16.msra.mxu0 %v906
    %1464 = vmatprep.subr.bf16.mxu0 %v911
    %1465 = vmatpush1.bf16.msra.mxu0 %v910
    %1466 = vmatprep.subr.bf16.mxu0 %v915
    %1467 = vmatpush1.bf16.msra.mxu0 %v914
    %1468 = vmatprep.subr.bf16.mxu0 %v919
    %1469 = vmatpush1.bf16.msra.mxu0 %v918
    %1470 = vmatprep.subr.bf16.mxu0 %v923
    %1471 = vmatpush1.bf16.msra.mxu0 %v922
    %1472 = vmatprep.subr.bf16.mxu0 %v927
    %1473 = vmatpush1.bf16.msra.mxu0 %v926
    %1474 = vmatprep.subr.bf16.mxu0 %v931
    %1475 = vmatpush1.bf16.msra.mxu0 %v930
    %1476 = vmatprep.subr.bf16.mxu0 %v935
    %1477 = vmatpush1.bf16.msra.mxu0 %v934
    %1478 = vmatprep.subr.bf16.mxu0 %v939
    %1479 = vmatpush1.bf16.msra.mxu0 %v938
    %1480 = vmatprep.subr.bf16.mxu0 %v943
    %1481 = vmatpush1.bf16.msra.mxu0 %v942
    %1482 = vmatprep.subr.bf16.mxu0 %v947
    %1483 = vmatpush1.bf16.msra.mxu0 %v946
    %1484 = vmatprep.subr.bf16.mxu0 %v951
    %1485 = vmatpush1.bf16.msra.mxu0 %v950
    %1486 = vmatprep.subr.bf16.mxu0 %v955
    %1487 = vmatpush1.bf16.msra.mxu0 %v954
    %1488 = vmatprep.subr.bf16.mxu0 %v959
    %1489 = vmatpush1.bf16.msra.mxu0 %v958
    %1490 = vmatprep.subr.bf16.mxu0 %v963
    %1491 = vmatpush1.bf16.msra.mxu0 %v962
    %1492 = vmatprep.mubr.bf16.mxu0 %v88
    %1493 = vmatmul.mubr.bf16.gmra.mrb[0].mxu0 %v87
    %v1494 = vpop.f32.mrb[0].mxu0
    %v1495 = vadd.f32 %v303, %v1494
    %v1496 = vpop.f32.mrb[0].mxu0
    %v1497 = vadd.f32 %v307, %v1496
    %v1498 = vpop.f32.mrb[0].mxu0
    %v1499 = vpop.f32.mrb[0].mxu0
    %1500 = vdwg.mxu0
    %1501 = vmatprep.subr.bf16.mxu0 %v967
    %1502 = vmatpush1.bf16.msra.mxu0 %v966
    %1503 = vmatprep.subr.bf16.mxu0 %v971
    %1504 = vmatpush1.bf16.msra.mxu0 %v970
    %1505 = vmatprep.subr.bf16.mxu0 %v975
    %1506 = vmatpush1.bf16.msra.mxu0 %v974
    %1507 = vmatprep.subr.bf16.mxu0 %v979
    %1508 = vmatpush1.bf16.msra.mxu0 %v978
    %1509 = vmatprep.subr.bf16.mxu0 %v983
    %1510 = vmatpush1.bf16.msra.mxu0 %v982
    %1511 = vmatprep.subr.bf16.mxu0 %v987
    %1512 = vmatpush1.bf16.msra.mxu0 %v986
    %1513 = vmatprep.subr.bf16.mxu0 %v991
    %1514 = vmatpush1.bf16.msra.mxu0 %v990
    %1515 = vmatprep.subr.bf16.mxu0 %v995
    %1516 = vmatpush1.bf16.msra.mxu0 %v994
    %1517 = vmatprep.subr.bf16.mxu0 %v999
    %1518 = vmatpush1.bf16.msra.mxu0 %v998
    %1519 = vmatprep.subr.bf16.mxu0 %v1003
    %1520 = vmatpush1.bf16.msra.mxu0 %v1002
    %1521 = vmatprep.subr.bf16.mxu0 %v1007
    %1522 = vmatpush1.bf16.msra.mxu0 %v1006
    %1523 = vmatprep.subr.bf16.mxu0 %v1011
    %1524 = vmatpush1.bf16.msra.mxu0 %v1010
    %1525 = vmatprep.subr.bf16.mxu0 %v1015
    %1526 = vmatpush1.bf16.msra.mxu0 %v1014
    %1527 = vmatprep.subr.bf16.mxu0 %v1019
    %1528 = vmatpush1.bf16.msra.mxu0 %v1018
    %1529 = vmatprep.subr.bf16.mxu0 %v1023
    %1530 = vmatpush1.bf16.msra.mxu0 %v1022
    %1531 = vmatprep.subr.bf16.mxu0 %v1027
    %1532 = vmatpush1.bf16.msra.mxu0 %v1026
    %1533 = vmatprep.mubr.bf16.mxu0 %v90
    %1534 = vmatmul.mubr.bf16.gmra.mrb[0].mxu0 %v89
    %v1535 = vpop.f32.mrb[0].mxu0
    %v1536 = vadd.f32 %v1495, %v1535
    %v1537 = vpop.f32.mrb[0].mxu0
    %v1538 = vadd.f32 %v1497, %v1537
    %v1539 = vpop.f32.mrb[0].mxu0
    %v1540 = vpop.f32.mrb[0].mxu0
    %1541 = vdwg.mxu0
    %1542 = vmatprep.subr.bf16.mxu0 %v1031
    %1543 = vmatpush1.bf16.msra.mxu0 %v1030
    %1544 = vmatprep.subr.bf16.mxu0 %v1035
    %1545 = vmatpush1.bf16.msra.mxu0 %v1034
    %1546 = vmatprep.subr.bf16.mxu0 %v1039
    %1547 = vmatpush1.bf16.msra.mxu0 %v1038
    %1548 = vmatprep.subr.bf16.mxu0 %v1043
    %1549 = vmatpush1.bf16.msra.mxu0 %v1042
    %1550 = vmatprep.subr.bf16.mxu0 %v1047
    %1551 = vmatpush1.bf16.msra.mxu0 %v1046
    %1552 = vmatprep.subr.bf16.mxu0 %v1051
    %1553 = vmatpush1.bf16.msra.mxu0 %v1050
    %1554 = vmatprep.subr.bf16.mxu0 %v1055
    %1555 = vmatpush1.bf16.msra.mxu0 %v1054
    %1556 = vmatprep.subr.bf16.mxu0 %v1059
    %1557 = vmatpush1.bf16.msra.mxu0 %v1058
    %1558 = vmatprep.subr.bf16.mxu0 %v1063
    %1559 = vmatpush1.bf16.msra.mxu0 %v1062
    %1560 = vmatprep.subr.bf16.mxu0 %v1067
    %1561 = vmatpush1.bf16.msra.mxu0 %v1066
    %1562 = vmatprep.subr.bf16.mxu0 %v1071
    %1563 = vmatpush1.bf16.msra.mxu0 %v1070
    %1564 = vmatprep.subr.bf16.mxu0 %v1075
    %1565 = vmatpush1.bf16.msra.mxu0 %v1074
    %1566 = vmatprep.subr.bf16.mxu0 %v1079
    %1567 = vmatpush1.bf16.msra.mxu0 %v1078
    %1568 = vmatprep.subr.bf16.mxu0 %v1083
    %1569 = vmatpush1.bf16.msra.mxu0 %v1082
    %1570 = vmatprep.subr.bf16.mxu0 %v1087
    %1571 = vmatpush1.bf16.msra.mxu0 %v1086
    %1572 = vmatprep.subr.bf16.mxu0 %v1091
    %1573 = vmatpush1.bf16.msra.mxu0 %v1090
    %1574 = vmatprep.mubr.bf16.mxu0 %v92
    %1575 = vmatmul.mubr.bf16.gmra.mrb[0].mxu0 %v91
    %v1576 = vpop.f32.mrb[0].mxu0
    %v1577 = vadd.f32 %v1536, %v1576
    %v1578 = vpop.f32.mrb[0].mxu0
    %v1579 = vadd.f32 %v1538, %v1578
    %v1580 = vpop.f32.mrb[0].mxu0
    %v1581 = vpop.f32.mrb[0].mxu0
    %1582 = vdwg.mxu0
    %1583 = vmatprep.subr.bf16.mxu0 %v1095
    %1584 = vmatpush1.bf16.msra.mxu0 %v1094
    %1585 = vmatprep.subr.bf16.mxu0 0
    %1586 = vmatpush1.bf16.msra.mxu0 0
    %1587 = vmatprep.subr.bf16.mxu0 0
    %1588 = vmatpush1.bf16.msra.mxu0 0
    %1589 = vmatprep.subr.bf16.mxu0 0
    %1590 = vmatpush1.bf16.msra.mxu0 0
    %1591 = vmatprep.subr.bf16.mxu0 0
    %1592 = vmatpush1.bf16.msra.mxu0 0
    %1593 = vmatprep.subr.bf16.mxu0 0
    %1594 = vmatpush1.bf16.msra.mxu0 0
    %1595 = vmatprep.subr.bf16.mxu0 0
    %1596 = vmatpush1.bf16.msra.mxu0 0
    %1597 = vmatprep.subr.bf16.mxu0 0
    %1598 = vmatpush1.bf16.msra.mxu0 0
    %1599 = vmatprep.subr.bf16.mxu0 0
    %1600 = vmatpush1.bf16.msra.mxu0 0
    %1601 = vmatprep.subr.bf16.mxu0 0
    %1602 = vmatpush1.bf16.msra.mxu0 0
    %1603 = vmatprep.subr.bf16.mxu0 0
    %1604 = vmatpush1.bf16.msra.mxu0 0
    %1605 = vmatprep.subr.bf16.mxu0 0
    %1606 = vmatpush1.bf16.msra.mxu0 0
    %1607 = vmatprep.subr.bf16.mxu0 0
    %1608 = vmatpush1.bf16.msra.mxu0 0
    %1609 = vmatprep.subr.bf16.mxu0 0
    %1610 = vmatpush1.bf16.msra.mxu0 0
    %1611 = vmatprep.subr.bf16.mxu0 0
    %1612 = vmatpush1.bf16.msra.mxu0 0
    %1613 = vmatprep.subr.bf16.mxu0 0
    %1614 = vmatpush1.bf16.msra.mxu0 0
    %1615 = vmatprep.mubr.bf16.mxu0 0
    %1616 = vmatmul.mubr.bf16.gmra.mrb[0].mxu0 %v1294
    %v1617 = vpop.f32.mrb[0].mxu0
    %v1618 = vadd.f32 %v1577, %v1617
    %v1619 = vpop.f32.mrb[0].mxu0
    %v1620 = vadd.f32 %v1579, %v1619
    %v1621 = vpop.f32.mrb[0].mxu0
    %v1622 = vpop.f32.mrb[0].mxu0
    %1623 = vdwg.mxu0
    %v1624 = vmax.f32 %v1454, 0.0
    %v1625 = vmax.f32 %v1456, 0.0
    %v1626 = vmax.f32 %v1618, 0.0
    %v1627 = vmax.f32 %v1620, 0.0
    %v1628 = vpack.c.bf16 %v1624, %v1624
    %v1629 = vpack.c.bf16 %v1625, %v1625
    %v1630 = vpack.c.bf16 %v1626, %v1626
    %v1631 = vpack.c.bf16 %v1627, %v1627
    %v1636 = vunpack.c.l.b16 %v1628
    %v1637 = vunpack.c.l.b16 %v1629
    %v1638 = vunpack.c.l.b16 %v1630
    %v1639 = vunpack.c.l.b16 %v1631
    %v1640 = vpack.c.b16 %v1637, %v1636
    %v1641 = vpack.c.b16 %v1639, %v1638
    %1644 = vst [vmem:[#allocation2] sm:$0xff] %v1640
    %1645 = vst [vmem:[#allocation2 + $0x8] sm:$0xff] %v1641
    %v1646 = vld [vmem:[#allocation2] sm:$0xff]
    %v1647 = vld [vmem:[#allocation2 + $0x8] sm:$0xff]
    %v1648 = vld [vmem:[#allocation7] sm:$0xff]
    %v1649 = vld [vmem:[#allocation7 + $0x8] sm:$0xff]
    %v1650 = vld [vmem:[#allocation7 + $0x10] sm:$0xff]
    %v1651 = vld [vmem:[#allocation7 + $0x18] sm:$0xff]
    %v1652 = vld [vmem:[#allocation7 + $0x20] sm:$0xff]
    %v1653 = vld [vmem:[#allocation7 + $0x28] sm:$0xff]
    %v1654 = vld [vmem:[#allocation7 + $0x30] sm:$0xff]
    %v1655 = vld [vmem:[#allocation7 + $0x38] sm:$0xff]
    %v1656 = vld [vmem:[#allocation7 + $0x40] sm:$0xff]
    %v1657 = vld [vmem:[#allocation7 + $0x48] sm:$0xff]
    %v1658 = vld [vmem:[#allocation7 + $0x50] sm:$0xff]
    %v1659 = vld [vmem:[#allocation7 + $0x58] sm:$0xff]
    %v1660 = vld [vmem:[#allocation7 + $0x60] sm:$0xff]
    %v1661 = vld [vmem:[#allocation7 + $0x68] sm:$0xff]
    %v1662 = vld [vmem:[#allocation7 + $0x70] sm:$0xff]
    %v1663 = vld [vmem:[#allocation7 + $0x78] sm:$0xff]
    %v1664 = vld [vmem:[#allocation7 + $0x80] sm:$0xff]
    %v1665 = vld [vmem:[#allocation7 + $0x88] sm:$0xff]
    %v1666 = vld [vmem:[#allocation7 + $0x90] sm:$0xff]
    %v1667 = vld [vmem:[#allocation7 + $0x98] sm:$0xff]
    %v1668 = vld [vmem:[#allocation7 + $0xa0] sm:$0xff]
    %v1669 = vld [vmem:[#allocation7 + $0xa8] sm:$0xff]
    %v1670 = vld [vmem:[#allocation7 + $0xb0] sm:$0xff]
    %v1671 = vld [vmem:[#allocation7 + $0xb8] sm:$0xff]
    %v1672 = vld [vmem:[#allocation7 + $0xc0] sm:$0xff]
    %v1673 = vld [vmem:[#allocation7 + $0xc8] sm:$0xff]
    %v1674 = vld [vmem:[#allocation7 + $0xd0] sm:$0xff]
    %v1675 = vld [vmem:[#allocation7 + $0xd8] sm:$0xff]
    %v1676 = vld [vmem:[#allocation7 + $0xe0] sm:$0xff]
    %v1677 = vld [vmem:[#allocation7 + $0xe8] sm:$0xff]
    %v1678 = vld [vmem:[#allocation7 + $0xf0] sm:$0xff]
    %v1679 = vld [vmem:[#allocation7 + $0xf8] sm:$0xff]
    %v1680 = vld [vmem:[#allocation7 + $0x100] sm:$0xff]
    %v1681 = vld [vmem:[#allocation7 + $0x108] sm:$0xff]
    %v1682 = vld [vmem:[#allocation7 + $0x110] sm:$0xff]
    %v1683 = vld [vmem:[#allocation7 + $0x118] sm:$0xff]
    %v1684 = vld [vmem:[#allocation7 + $0x120] sm:$0xff]
    %v1685 = vld [vmem:[#allocation7 + $0x128] sm:$0xff]
    %v1686 = vld [vmem:[#allocation7 + $0x130] sm:$0xff]
    %v1687 = vld [vmem:[#allocation7 + $0x138] sm:$0xff]
    %v1688 = vld [vmem:[#allocation7 + $0x140] sm:$0xff]
    %v1689 = vld [vmem:[#allocation7 + $0x148] sm:$0xff]
    %v1690 = vld [vmem:[#allocation7 + $0x150] sm:$0xff]
    %v1691 = vld [vmem:[#allocation7 + $0x158] sm:$0xff]
    %v1692 = vld [vmem:[#allocation7 + $0x160] sm:$0xff]
    %v1693 = vld [vmem:[#allocation7 + $0x168] sm:$0xff]
    %v1694 = vld [vmem:[#allocation7 + $0x170] sm:$0xff]
    %v1695 = vld [vmem:[#allocation7 + $0x178] sm:$0xff]
    %v1696 = vld [vmem:[#allocation7 + $0x180] sm:$0xff]
    %v1697 = vld [vmem:[#allocation7 + $0x188] sm:$0xff]
    %v1698 = vld [vmem:[#allocation7 + $0x190] sm:$0xff]
    %v1699 = vld [vmem:[#allocation7 + $0x198] sm:$0xff]
    %v1700 = vld [vmem:[#allocation7 + $0x1a0] sm:$0xff]
    %v1701 = vld [vmem:[#allocation7 + $0x1a8] sm:$0xff]
    %v1702 = vld [vmem:[#allocation7 + $0x1b0] sm:$0xff]
    %v1703 = vld [vmem:[#allocation7 + $0x1b8] sm:$0xff]
    %v1704 = vld [vmem:[#allocation7 + $0x1c0] sm:$0xff]
    %v1705 = vld [vmem:[#allocation7 + $0x1c8] sm:$0xff]
    %v1706 = vld [vmem:[#allocation7 + $0x1d0] sm:$0xff]
    %v1707 = vld [vmem:[#allocation7 + $0x1d8] sm:$0xff]
    %v1708 = vld [vmem:[#allocation7 + $0x1e0] sm:$0xff]
    %v1709 = vld [vmem:[#allocation7 + $0x1e8] sm:$0xff]
    %v1710 = vld [vmem:[#allocation7 + $0x1f0] sm:$0xff]
    %v1711 = vld [vmem:[#allocation7 + $0x1f8] sm:$0xff]
    %v1712 = vld [vmem:[%s4] sm:$0x3]
    %v1714 = vlaneseq
    %v1715 = vshrl.u32 %v1714, 7
    %v1716 = vsub.s32 0, %v1715
    %v1717 = vrot.slane %v1712, %v1716
    %v1718 = vlaneseq
    %v1719 = vshrl.u32 %v1718, 7
    %v1720 = vsub.s32 1, %v1719
    %v1721 = vrot.slane %v1712, %v1720
    %v1726 = vunpack.c.l.b16 %v1646
    %v1727 = vunpack.c.h.b16 %v1646
    %v1728 = vunpack.c.l.b16 %v1647
    %v1729 = vunpack.c.h.b16 %v1647
    %v1730 = vpack.c.b16 %v1726, %v1726
    %v1731 = vpack.c.b16 %v1727, %v1727
    %v1732 = vpack.c.b16 %v1728, %v1728
    %v1733 = vpack.c.b16 %v1729, %v1729
    %v1802 = vunpack.c.l.b16 %v1648
    %v1803 = vunpack.c.h.b16 %v1648
    %v1804 = vunpack.c.l.b16 %v1649
    %v1805 = vunpack.c.h.b16 %v1649
    %v1806 = vunpack.c.l.b16 %v1650
    %v1807 = vunpack.c.h.b16 %v1650
    %v1808 = vunpack.c.l.b16 %v1651
    %v1809 = vunpack.c.h.b16 %v1651
    %v1810 = vunpack.c.l.b16 %v1652
    %v1811 = vunpack.c.h.b16 %v1652
    %v1812 = vunpack.c.l.b16 %v1653
    %v1813 = vunpack.c.h.b16 %v1653
    %v1814 = vunpack.c.l.b16 %v1654
    %v1815 = vunpack.c.h.b16 %v1654
    %v1816 = vunpack.c.l.b16 %v1655
    %v1817 = vunpack.c.h.b16 %v1655
    %v1818 = vunpack.c.l.b16 %v1656
    %v1819 = vunpack.c.h.b16 %v1656
    %v1820 = vunpack.c.l.b16 %v1657
    %v1821 = vunpack.c.h.b16 %v1657
    %v1822 = vunpack.c.l.b16 %v1658
    %v1823 = vunpack.c.h.b16 %v1658
    %v1824 = vunpack.c.l.b16 %v1659
    %v1825 = vunpack.c.h.b16 %v1659
    %v1826 = vunpack.c.l.b16 %v1660
    %v1827 = vunpack.c.h.b16 %v1660
    %v1828 = vunpack.c.l.b16 %v1661
    %v1829 = vunpack.c.h.b16 %v1661
    %v1830 = vunpack.c.l.b16 %v1662
    %v1831 = vunpack.c.h.b16 %v1662
    %v1832 = vunpack.c.l.b16 %v1663
    %v1833 = vunpack.c.h.b16 %v1663
    %v1834 = vunpack.c.l.b16 %v1664
    %v1835 = vunpack.c.h.b16 %v1664
    %v1836 = vunpack.c.l.b16 %v1665
    %v1837 = vunpack.c.h.b16 %v1665
    %v1838 = vunpack.c.l.b16 %v1666
    %v1839 = vunpack.c.h.b16 %v1666
    %v1840 = vunpack.c.l.b16 %v1667
    %v1841 = vunpack.c.h.b16 %v1667
    %v1842 = vunpack.c.l.b16 %v1668
    %v1843 = vunpack.c.h.b16 %v1668
    %v1844 = vunpack.c.l.b16 %v1669
    %v1845 = vunpack.c.h.b16 %v1669
    %v1846 = vunpack.c.l.b16 %v1670
    %v1847 = vunpack.c.h.b16 %v1670
    %v1848 = vunpack.c.l.b16 %v1671
    %v1849 = vunpack.c.h.b16 %v1671
    %v1850 = vunpack.c.l.b16 %v1672
    %v1851 = vunpack.c.h.b16 %v1672
    %v1852 = vunpack.c.l.b16 %v1673
    %v1853 = vunpack.c.h.b16 %v1673
    %v1854 = vunpack.c.l.b16 %v1674
    %v1855 = vunpack.c.h.b16 %v1674
    %v1856 = vunpack.c.l.b16 %v1675
    %v1857 = vunpack.c.h.b16 %v1675
    %v1858 = vunpack.c.l.b16 %v1676
    %v1859 = vunpack.c.h.b16 %v1676
    %v1860 = vunpack.c.l.b16 %v1677
    %v1861 = vunpack.c.h.b16 %v1677
    %v1862 = vunpack.c.l.b16 %v1678
    %v1863 = vunpack.c.h.b16 %v1678
    %v1864 = vunpack.c.l.b16 %v1679
    %v1865 = vunpack.c.h.b16 %v1679
    %v1866 = vunpack.c.l.b16 %v1680
    %v1867 = vunpack.c.h.b16 %v1680
    %v1868 = vunpack.c.l.b16 %v1681
    %v1869 = vunpack.c.h.b16 %v1681
    %v1870 = vunpack.c.l.b16 %v1682
    %v1871 = vunpack.c.h.b16 %v1682
    %v1872 = vunpack.c.l.b16 %v1683
    %v1873 = vunpack.c.h.b16 %v1683
    %v1874 = vunpack.c.l.b16 %v1684
    %v1875 = vunpack.c.h.b16 %v1684
    %v1876 = vunpack.c.l.b16 %v1685
    %v1877 = vunpack.c.h.b16 %v1685
    %v1878 = vunpack.c.l.b16 %v1686
    %v1879 = vunpack.c.h.b16 %v1686
    %v1880 = vunpack.c.l.b16 %v1687
    %v1881 = vunpack.c.h.b16 %v1687
    %v1882 = vunpack.c.l.b16 %v1688
    %v1883 = vunpack.c.h.b16 %v1688
    %v1884 = vunpack.c.l.b16 %v1689
    %v1885 = vunpack.c.h.b16 %v1689
    %v1886 = vunpack.c.l.b16 %v1690
    %v1887 = vunpack.c.h.b16 %v1690
    %v1888 = vunpack.c.l.b16 %v1691
    %v1889 = vunpack.c.h.b16 %v1691
    %v1890 = vunpack.c.l.b16 %v1692
    %v1891 = vunpack.c.h.b16 %v1692
    %v1892 = vunpack.c.l.b16 %v1693
    %v1893 = vunpack.c.h.b16 %v1693
    %v1894 = vunpack.c.l.b16 %v1694
    %v1895 = vunpack.c.h.b16 %v1694
    %v1896 = vunpack.c.l.b16 %v1695
    %v1897 = vunpack.c.h.b16 %v1695
    %v1898 = vunpack.c.l.b16 %v1696
    %v1899 = vunpack.c.h.b16 %v1696
    %v1900 = vunpack.c.l.b16 %v1697
    %v1901 = vunpack.c.h.b16 %v1697
    %v1902 = vunpack.c.l.b16 %v1698
    %v1903 = vunpack.c.h.b16 %v1698
    %v1904 = vunpack.c.l.b16 %v1699
    %v1905 = vunpack.c.h.b16 %v1699
    %v1906 = vunpack.c.l.b16 %v1700
    %v1907 = vunpack.c.h.b16 %v1700
    %v1908 = vunpack.c.l.b16 %v1701
    %v1909 = vunpack.c.h.b16 %v1701
    %v1910 = vunpack.c.l.b16 %v1702
    %v1911 = vunpack.c.h.b16 %v1702
    %v1912 = vunpack.c.l.b16 %v1703
    %v1913 = vunpack.c.h.b16 %v1703
    %v1914 = vunpack.c.l.b16 %v1704
    %v1915 = vunpack.c.h.b16 %v1704
    %v1916 = vunpack.c.l.b16 %v1705
    %v1917 = vunpack.c.h.b16 %v1705
    %v1918 = vunpack.c.l.b16 %v1706
    %v1919 = vunpack.c.h.b16 %v1706
    %v1920 = vunpack.c.l.b16 %v1707
    %v1921 = vunpack.c.h.b16 %v1707
    %v1922 = vunpack.c.l.b16 %v1708
    %v1923 = vunpack.c.h.b16 %v1708
    %v1924 = vunpack.c.l.b16 %v1709
    %v1925 = vunpack.c.h.b16 %v1709
    %v1926 = vunpack.c.l.b16 %v1710
    %v1927 = vunpack.c.h.b16 %v1710
    %v1928 = vunpack.c.l.b16 %v1711
    %v1929 = vunpack.c.h.b16 %v1711
    %v1930 = vpack.c.b16 %v1804, %v1802
    %v1931 = vpack.c.b16 %v1805, %v1803
    %v1932 = vpack.c.b16 %v1808, %v1806
    %v1933 = vpack.c.b16 %v1809, %v1807
    %v1934 = vpack.c.b16 %v1812, %v1810
    %v1935 = vpack.c.b16 %v1813, %v1811
    %v1936 = vpack.c.b16 %v1816, %v1814
    %v1937 = vpack.c.b16 %v1817, %v1815
    %v1938 = vpack.c.b16 %v1820, %v1818
    %v1939 = vpack.c.b16 %v1821, %v1819
    %v1940 = vpack.c.b16 %v1824, %v1822
    %v1941 = vpack.c.b16 %v1825, %v1823
    %v1942 = vpack.c.b16 %v1828, %v1826
    %v1943 = vpack.c.b16 %v1829, %v1827
    %v1944 = vpack.c.b16 %v1832, %v1830
    %v1945 = vpack.c.b16 %v1833, %v1831
    %v1946 = vpack.c.b16 %v1836, %v1834
    %v1947 = vpack.c.b16 %v1837, %v1835
    %v1948 = vpack.c.b16 %v1840, %v1838
    %v1949 = vpack.c.b16 %v1841, %v1839
    %v1950 = vpack.c.b16 %v1844, %v1842
    %v1951 = vpack.c.b16 %v1845, %v1843
    %v1952 = vpack.c.b16 %v1848, %v1846
    %v1953 = vpack.c.b16 %v1849, %v1847
    %v1954 = vpack.c.b16 %v1852, %v1850
    %v1955 = vpack.c.b16 %v1853, %v1851
    %v1956 = vpack.c.b16 %v1856, %v1854
    %v1957 = vpack.c.b16 %v1857, %v1855
    %v1958 = vpack.c.b16 %v1860, %v1858
    %v1959 = vpack.c.b16 %v1861, %v1859
    %v1960 = vpack.c.b16 %v1864, %v1862
    %v1961 = vpack.c.b16 %v1865, %v1863
    %v1962 = vpack.c.b16 %v1868, %v1866
    %v1963 = vpack.c.b16 %v1869, %v1867
    %v1964 = vpack.c.b16 %v1872, %v1870
    %v1965 = vpack.c.b16 %v1873, %v1871
    %v1966 = vpack.c.b16 %v1876, %v1874
    %v1967 = vpack.c.b16 %v1877, %v1875
    %v1968 = vpack.c.b16 %v1880, %v1878
    %v1969 = vpack.c.b16 %v1881, %v1879
    %v1970 = vpack.c.b16 %v1884, %v1882
    %v1971 = vpack.c.b16 %v1885, %v1883
    %v1972 = vpack.c.b16 %v1888, %v1886
    %v1973 = vpack.c.b16 %v1889, %v1887
    %v1974 = vpack.c.b16 %v1892, %v1890
    %v1975 = vpack.c.b16 %v1893, %v1891
    %v1976 = vpack.c.b16 %v1896, %v1894
    %v1977 = vpack.c.b16 %v1897, %v1895
    %v1978 = vpack.c.b16 %v1900, %v1898
    %v1979 = vpack.c.b16 %v1901, %v1899
    %v1980 = vpack.c.b16 %v1904, %v1902
    %v1981 = vpack.c.b16 %v1905, %v1903
    %v1982 = vpack.c.b16 %v1908, %v1906
    %v1983 = vpack.c.b16 %v1909, %v1907
    %v1984 = vpack.c.b16 %v1912, %v1910
    %v1985 = vpack.c.b16 %v1913, %v1911
    %v1986 = vpack.c.b16 %v1916, %v1914
    %v1987 = vpack.c.b16 %v1917, %v1915
    %v1988 = vpack.c.b16 %v1920, %v1918
    %v1989 = vpack.c.b16 %v1921, %v1919
    %v1990 = vpack.c.b16 %v1924, %v1922
    %v1991 = vpack.c.b16 %v1925, %v1923
    %v1992 = vpack.c.b16 %v1928, %v1926
    %v1993 = vpack.c.b16 %v1929, %v1927
    %2058 = vmatprep.subr.bf16.mxu0 %v1931
    %2059 = vmatpush1.bf16.msra.mxu0 %v1930
    %2060 = vmatprep.subr.bf16.mxu0 %v1933
    %2061 = vmatpush1.bf16.msra.mxu0 %v1932
    %2062 = vmatprep.subr.bf16.mxu0 %v1935
    %2063 = vmatpush1.bf16.msra.mxu0 %v1934
    %2064 = vmatprep.subr.bf16.mxu0 %v1937
    %2065 = vmatpush1.bf16.msra.mxu0 %v1936
    %2066 = vmatprep.subr.bf16.mxu0 %v1939
    %2067 = vmatpush1.bf16.msra.mxu0 %v1938
    %2068 = vmatprep.subr.bf16.mxu0 %v1941
    %2069 = vmatpush1.bf16.msra.mxu0 %v1940
    %2070 = vmatprep.subr.bf16.mxu0 %v1943
    %2071 = vmatpush1.bf16.msra.mxu0 %v1942
    %2072 = vmatprep.subr.bf16.mxu0 %v1945
    %2073 = vmatpush1.bf16.msra.mxu0 %v1944
    %2074 = vmatprep.subr.bf16.mxu0 %v1947
    %2075 = vmatpush1.bf16.msra.mxu0 %v1946
    %2076 = vmatprep.subr.bf16.mxu0 %v1949
    %2077 = vmatpush1.bf16.msra.mxu0 %v1948
    %2078 = vmatprep.subr.bf16.mxu0 %v1951
    %2079 = vmatpush1.bf16.msra.mxu0 %v1950
    %2080 = vmatprep.subr.bf16.mxu0 %v1953
    %2081 = vmatpush1.bf16.msra.mxu0 %v1952
    %2082 = vmatprep.subr.bf16.mxu0 %v1955
    %2083 = vmatpush1.bf16.msra.mxu0 %v1954
    %2084 = vmatprep.subr.bf16.mxu0 %v1957
    %2085 = vmatpush1.bf16.msra.mxu0 %v1956
    %2086 = vmatprep.subr.bf16.mxu0 %v1959
    %2087 = vmatpush1.bf16.msra.mxu0 %v1958
    %2088 = vmatprep.subr.bf16.mxu0 %v1961
    %2089 = vmatpush1.bf16.msra.mxu0 %v1960
    %2090 = vmatprep.mubr.bf16.mxu0 %v1731
    %2091 = vmatmul.mubr.bf16.gmra.mrb[0].mxu0 %v1730
    %v2092 = vpop.f32.mrb[0].mxu0
    %v2093 = vadd.f32 %v1717, %v2092
    %v2094 = vpop.f32.mrb[0].mxu0
    %v2095 = vadd.f32 %v1721, %v2094
    %v2096 = vpop.f32.mrb[0].mxu0
    %v2097 = vpop.f32.mrb[0].mxu0
    %2098 = vdwg.mxu0
    %2099 = vmatprep.subr.bf16.mxu0 %v1963
    %2100 = vmatpush1.bf16.msra.mxu0 %v1962
    %2101 = vmatprep.subr.bf16.mxu0 %v1965
    %2102 = vmatpush1.bf16.msra.mxu0 %v1964
    %2103 = vmatprep.subr.bf16.mxu0 %v1967
    %2104 = vmatpush1.bf16.msra.mxu0 %v1966
    %2105 = vmatprep.subr.bf16.mxu0 %v1969
    %2106 = vmatpush1.bf16.msra.mxu0 %v1968
    %2107 = vmatprep.subr.bf16.mxu0 %v1971
    %2108 = vmatpush1.bf16.msra.mxu0 %v1970
    %2109 = vmatprep.subr.bf16.mxu0 %v1973
    %2110 = vmatpush1.bf16.msra.mxu0 %v1972
    %2111 = vmatprep.subr.bf16.mxu0 %v1975
    %2112 = vmatpush1.bf16.msra.mxu0 %v1974
    %2113 = vmatprep.subr.bf16.mxu0 %v1977
    %2114 = vmatpush1.bf16.msra.mxu0 %v1976
    %2115 = vmatprep.subr.bf16.mxu0 %v1979
    %2116 = vmatpush1.bf16.msra.mxu0 %v1978
    %2117 = vmatprep.subr.bf16.mxu0 %v1981
    %2118 = vmatpush1.bf16.msra.mxu0 %v1980
    %2119 = vmatprep.subr.bf16.mxu0 %v1983
    %2120 = vmatpush1.bf16.msra.mxu0 %v1982
    %2121 = vmatprep.subr.bf16.mxu0 %v1985
    %2122 = vmatpush1.bf16.msra.mxu0 %v1984
    %2123 = vmatprep.subr.bf16.mxu0 %v1987
    %2124 = vmatpush1.bf16.msra.mxu0 %v1986
    %2125 = vmatprep.subr.bf16.mxu0 %v1989
    %2126 = vmatpush1.bf16.msra.mxu0 %v1988
    %2127 = vmatprep.subr.bf16.mxu0 %v1991
    %2128 = vmatpush1.bf16.msra.mxu0 %v1990
    %2129 = vmatprep.subr.bf16.mxu0 %v1993
    %2130 = vmatpush1.bf16.msra.mxu0 %v1992
    %2131 = vmatprep.mubr.bf16.mxu0 %v1733
    %2132 = vmatmul.mubr.bf16.gmra.mrb[0].mxu0 %v1732
    %v2133 = vpop.f32.mrb[0].mxu0
    %v2134 = vadd.f32 %v2093, %v2133
    %v2135 = vpop.f32.mrb[0].mxu0
    %v2136 = vadd.f32 %v2095, %v2135
    %v2137 = vpop.f32.mrb[0].mxu0
    %v2138 = vpop.f32.mrb[0].mxu0
    %2139 = vdwg.mxu0
    %v2140 = vmax.f32 %v2134, 0.0
    %v2141 = vmax.f32 %v2136, 0.0
    %v2142 = vpack.c.bf16 %v2140, %v2140
    %v2143 = vpack.c.bf16 %v2141, %v2141
    %v2144 = vld [vmem:[#allocation8] sm:$0xf]
    %v2145 = vld [vmem:[#allocation8 + $0x4] sm:$0xf]
    %v2146 = vld [vmem:[#allocation8 + $0x8] sm:$0xf]
    %v2147 = vld [vmem:[#allocation8 + $0xc] sm:$0xf]
    %v2148 = vld [vmem:[#allocation8 + $0x10] sm:$0xf]
    %v2149 = vld [vmem:[#allocation8 + $0x14] sm:$0xf]
    %v2150 = vld [vmem:[#allocation8 + $0x18] sm:$0xf]
    %v2151 = vld [vmem:[#allocation8 + $0x1c] sm:$0xf]
    %v2152 = vld [vmem:[#allocation8 + $0x20] sm:$0xf]
    %v2153 = vld [vmem:[#allocation8 + $0x24] sm:$0xf]
    %v2154 = vld [vmem:[#allocation8 + $0x28] sm:$0xf]
    %v2155 = vld [vmem:[#allocation8 + $0x2c] sm:$0xf]
    %v2156 = vld [vmem:[#allocation8 + $0x30] sm:$0xf]
    %v2157 = vld [vmem:[#allocation8 + $0x34] sm:$0xf]
    %v2158 = vld [vmem:[#allocation8 + $0x38] sm:$0xf]
    %v2159 = vld [vmem:[#allocation8 + $0x3c] sm:$0xf]
    %v2160 = vld [vmem:[#allocation8 + $0x40] sm:$0xf]
    %v2161 = vld [vmem:[#allocation8 + $0x44] sm:$0xf]
    %v2162 = vld [vmem:[#allocation8 + $0x48] sm:$0xf]
    %v2163 = vld [vmem:[#allocation8 + $0x4c] sm:$0xf]
    %v2164 = vld [vmem:[#allocation8 + $0x50] sm:$0xf]
    %v2165 = vld [vmem:[#allocation8 + $0x54] sm:$0xf]
    %v2166 = vld [vmem:[#allocation8 + $0x58] sm:$0xf]
    %v2167 = vld [vmem:[#allocation8 + $0x5c] sm:$0xf]
    %v2168 = vld [vmem:[#allocation8 + $0x60] sm:$0xf]
    %v2169 = vld [vmem:[#allocation8 + $0x64] sm:$0xf]
    %v2170 = vld [vmem:[#allocation8 + $0x68] sm:$0xf]
    %v2171 = vld [vmem:[#allocation8 + $0x6c] sm:$0xf]
    %v2172 = vld [vmem:[#allocation8 + $0x70] sm:$0xf]
    %v2173 = vld [vmem:[#allocation8 + $0x74] sm:$0xf]
    %v2174 = vld [vmem:[#allocation8 + $0x78] sm:$0xf]
    %v2175 = vld [vmem:[#allocation8 + $0x7c] sm:$0xf]
    %v2176 = vld [vmem:[%s6] sm:$0x1]
    %v2178 = vlaneseq
    %v2179 = vshrl.u32 %v2178, 7
    %v2180 = vsub.s32 0, %v2179
    %v2181 = vrot.slane %v2176, %v2180
    %v2215 = vunpack.c.l.b16 %v2144
    %v2216 = vunpack.c.l.b16 %v2145
    %v2217 = vunpack.c.l.b16 %v2146
    %v2218 = vunpack.c.l.b16 %v2147
    %v2219 = vunpack.c.l.b16 %v2148
    %v2220 = vunpack.c.l.b16 %v2149
    %v2221 = vunpack.c.l.b16 %v2150
    %v2222 = vunpack.c.l.b16 %v2151
    %v2223 = vunpack.c.l.b16 %v2152
    %v2224 = vunpack.c.l.b16 %v2153
    %v2225 = vunpack.c.l.b16 %v2154
    %v2226 = vunpack.c.l.b16 %v2155
    %v2227 = vunpack.c.l.b16 %v2156
    %v2228 = vunpack.c.l.b16 %v2157
    %v2229 = vunpack.c.l.b16 %v2158
    %v2230 = vunpack.c.l.b16 %v2159
    %v2231 = vunpack.c.l.b16 %v2160
    %v2232 = vunpack.c.l.b16 %v2161
    %v2233 = vunpack.c.l.b16 %v2162
    %v2234 = vunpack.c.l.b16 %v2163
    %v2235 = vunpack.c.l.b16 %v2164
    %v2236 = vunpack.c.l.b16 %v2165
    %v2237 = vunpack.c.l.b16 %v2166
    %v2238 = vunpack.c.l.b16 %v2167
    %v2239 = vunpack.c.l.b16 %v2168
    %v2240 = vunpack.c.l.b16 %v2169
    %v2241 = vunpack.c.l.b16 %v2170
    %v2242 = vunpack.c.l.b16 %v2171
    %v2243 = vunpack.c.l.b16 %v2172
    %v2244 = vunpack.c.l.b16 %v2173
    %v2245 = vunpack.c.l.b16 %v2174
    %v2246 = vunpack.c.l.b16 %v2175
    %v2247 = vpack.c.b16 %v2216, %v2215
    %v2248 = vpack.c.b16 %v2218, %v2217
    %v2249 = vpack.c.b16 %v2220, %v2219
    %v2250 = vpack.c.b16 %v2222, %v2221
    %v2251 = vpack.c.b16 %v2224, %v2223
    %v2252 = vpack.c.b16 %v2226, %v2225
    %v2253 = vpack.c.b16 %v2228, %v2227
    %v2254 = vpack.c.b16 %v2230, %v2229
    %v2255 = vpack.c.b16 %v2232, %v2231
    %v2256 = vpack.c.b16 %v2234, %v2233
    %v2257 = vpack.c.b16 %v2236, %v2235
    %v2258 = vpack.c.b16 %v2238, %v2237
    %v2259 = vpack.c.b16 %v2240, %v2239
    %v2260 = vpack.c.b16 %v2242, %v2241
    %v2261 = vpack.c.b16 %v2244, %v2243
    %v2262 = vpack.c.b16 %v2246, %v2245
    %2279 = vmatprep.subr.bf16.mxu0 0
    %2280 = vmatpush1.bf16.msra.mxu0 %v2247
    %2281 = vmatprep.subr.bf16.mxu0 0
    %2282 = vmatpush1.bf16.msra.mxu0 %v2248
    %2283 = vmatprep.subr.bf16.mxu0 0
    %2284 = vmatpush1.bf16.msra.mxu0 %v2249
    %2285 = vmatprep.subr.bf16.mxu0 0
    %2286 = vmatpush1.bf16.msra.mxu0 %v2250
    %2287 = vmatprep.subr.bf16.mxu0 0
    %2288 = vmatpush1.bf16.msra.mxu0 %v2251
    %2289 = vmatprep.subr.bf16.mxu0 0
    %2290 = vmatpush1.bf16.msra.mxu0 %v2252
    %2291 = vmatprep.subr.bf16.mxu0 0
    %2292 = vmatpush1.bf16.msra.mxu0 %v2253
    %2293 = vmatprep.subr.bf16.mxu0 0
    %2294 = vmatpush1.bf16.msra.mxu0 %v2254
    %2295 = vmatprep.subr.bf16.mxu0 0
    %2296 = vmatpush1.bf16.msra.mxu0 %v2255
    %2297 = vmatprep.subr.bf16.mxu0 0
    %2298 = vmatpush1.bf16.msra.mxu0 %v2256
    %2299 = vmatprep.subr.bf16.mxu0 0
    %2300 = vmatpush1.bf16.msra.mxu0 %v2257
    %2301 = vmatprep.subr.bf16.mxu0 0
    %2302 = vmatpush1.bf16.msra.mxu0 %v2258
    %2303 = vmatprep.subr.bf16.mxu0 0
    %2304 = vmatpush1.bf16.msra.mxu0 %v2259
    %2305 = vmatprep.subr.bf16.mxu0 0
    %2306 = vmatpush1.bf16.msra.mxu0 %v2260
    %2307 = vmatprep.subr.bf16.mxu0 0
    %2308 = vmatpush1.bf16.msra.mxu0 %v2261
    %2309 = vmatprep.subr.bf16.mxu0 0
    %2310 = vmatpush1.bf16.msra.mxu0 %v2262
    %2311 = vmatprep.mubr.bf16.mxu0 %v2143
    %2312 = vmatmul.mubr.bf16.gmra.mrb[0].mxu0 %v2142
    %v2313 = vpop.f32.mrb[0].mxu0
    %v2314 = vadd.f32 %v2181, %v2313
    %v2315 = vpop.f32.mrb[0].mxu0
    %v2316 = vpop.f32.mrb[0].mxu0
    %v2317 = vpop.f32.mrb[0].mxu0
    %2318 = vdwg.mxu0
    %v2319 = vpack.c.bf16 %v2314, %v2314
    %2320 = vst [vmem:[%s7] sm:$0xf] %v2319
    // Predicated region
    $region46: #{mlp_forward.1} parent=1 // pred_check
      _
    $region47: #{mlp_forward.1} parent=1 // pred_check_branch
      %2322 = sbr.rel (0) target = $region49
    $region48: #{mlp_forward.1} parent=1 // pred_region
      _
    $region49: #{mlp_forward.1} parent=1 // pred_fallthru
      _
    // Predicated region
    $region50: #{mlp_forward.1} parent=1 // pred_check
      _
    $region51: #{mlp_forward.1} parent=1 // pred_check_branch
      %2324 = sbr.rel (0) target = $region53
    $region52: #{mlp_forward.1} parent=1 // pred_region
      _
    $region53: #{mlp_forward.1} parent=1 // pred_fallthru
      _
    %2325 = vsyncpa [#allocation4], 1
    %2326 = vsyncpa [#allocation6], 1
    %2327 = vsyncpa [#allocation9], 1

</llo_original>
